<compile_context>
chip_gen: v5e
topology: v5e:2x2
jax: 0.10.0
libtpu: 0.0.40
codegen_flags: <defaults>
</compile_context>

<pallas_src>
import jax
import jax.numpy as jnp
import numpy as np
from jax.experimental import pallas as pl
from jax.experimental.pallas import tpu as pltpu

TB = 8  # batch tile (one sublane tile of rows per spatial position)


# ---------------------------------------------------------------------------
# In-kernel helpers (traced inside the Pallas kernel)
# ---------------------------------------------------------------------------
def _matsum(lhs_list, w_ref):
    """sum_k lhs_list[k] @ w_ref[k]  with f32 accumulation on the MXU."""
    acc = jnp.dot(lhs_list[0], w_ref[0], preferred_element_type=jnp.float32)
    for k in range(1, len(lhs_list)):
        acc = acc + jnp.dot(lhs_list[k], w_ref[k],
                            preferred_element_type=jnp.float32)
    return acc


def _pool_rows(h, n_out, tb):
    """Max over adjacent spatial-row pairs.

    h has rows ordered (spatial_row, batch) with `tb` batch rows per spatial
    row, so the two pool partners are whole, tile-aligned row groups.
    """
    h3 = h.reshape(n_out, 2 * tb, 128)
    return jnp.maximum(h3[:, :tb, :], h3[:, tb:, :]).reshape(n_out * tb, 128)


# ---------------------------------------------------------------------------
# The fused LeNet5Half kernel
# ---------------------------------------------------------------------------
def _lenet_kernel(x_ref, t1e_ref, t1o_ref, t2e_ref, t2o_ref, wf1_ref, wf2_ref,
                  b1_ref, b2_ref, bf1_ref, bf2_ref, o_ref):
    tb = x_ref.shape[1]  # batch tile (8)

    # --- conv1 (5x5, 1->10) + ReLU + 2x2 max-pool ---------------------------
    # x block: (28, tb, 128): axis0 = image row, sublanes = batch, lanes = image
    # column (28 real, zero padded to 128).
    x = x_ref[...]
    rows = [x[ky:ky + 24].reshape(24 * tb, 128) for ky in range(5)]
    y1 = jnp.maximum(_matsum(rows, t1e_ref),            # even output columns
                     _matsum(rows, t1o_ref))            # odd  output columns -> pool over width
    h1 = jnp.maximum(y1 + b1_ref[...], 0.0)             # (24*tb,128) rows=(oy,b), cols=oc*12+px
    a1 = _pool_rows(h1, 12, tb)                         # (12*tb,128) rows=(py,b)  pool over height

    # --- conv2 (5x5, 10->25) + ReLU + 2x2 max-pool --------------------------
    s = [a1[ky * tb:(ky + 8) * tb, :] for ky in range(5)]
    y2 = jnp.maximum(_matsum(s, t2e_ref), _matsum(s, t2o_ref))
    h2 = jnp.maximum(y2 + b2_ref[...], 0.0)             # (8*tb,128) rows=(qy,b), cols=m*4+hx
    a2 = _pool_rows(h2, 4, tb)                          # (4*tb,128) rows=(hy,b)

    # --- fc1 + ReLU, fc2 -----------------------------------------------------
    f = [a2[hy * tb:(hy + 1) * tb, :] for hy in range(4)]
    f1 = jnp.maximum(_matsum(f, wf1_ref) + bf1_ref[...], 0.0)   # (tb,128), 100 real cols
    o_ref[...] = (jnp.dot(f1, wf2_ref[...], preferred_element_type=jnp.float32)
                  + bf2_ref[...])                               # logits in cols 0..9


# ---------------------------------------------------------------------------
# One-time weight repacking (PyTorch layout -> MXU-friendly padded matrices)
# ---------------------------------------------------------------------------
def prepare_params(params):
    """Repack PyTorch-layout params into lane-dense (…,128,128) matrices.

    Column layouts (zero padded to 128 lanes):
      conv1 output : col = oc*12 + px   (oc = 0..9,  px = pooled-x = 0..11)
      conv2 output : col = m*4  + hx    (m  = 0..24, hx = pooled-x = 0..3)
      fc outputs   : col = unit index
    """
    f32 = jnp.float32
    w1 = params["conv1_w"].astype(f32)[:, 0]     # (10, 5, 5)
    w2 = params["conv2_w"].astype(f32)           # (25, 10, 5, 5)
    fw1 = params["fc1_w"].astype(f32)            # (100, 400)
    fw2 = params["fc2_w"].astype(f32)            # (10, 100)

    # conv1 row-Toeplitz: T1[par, ky, ix, oc*12+px] = w1[oc, ky, ix-(2*px+par)]
    par, ky, oc, px, kx = (a.ravel() for a in np.indices((2, 5, 10, 12, 5)))
    t1 = jnp.zeros((2, 5, 128, 128), f32).at[
        par, ky, 2 * px + par + kx, oc * 12 + px].set(w1[oc, ky, kx])

    # conv2 row-Toeplitz: T2[par, ky, c*12+px, m*4+hx] = w2[m, c, ky, px-(2*hx+par)]
    par, ky, m, c, hx, kx = (a.ravel() for a in np.indices((2, 5, 25, 10, 4, 5)))
    t2 = jnp.zeros((2, 5, 128, 128), f32).at[
        par, ky, c * 12 + 2 * hx + par + kx, m * 4 + hx].set(w2[m, c, ky, kx])

    # fc1: fold the pooled-row index hy into 4 matrices so that
    # fc1(x) = sum_hy A2[hy] @ Wfc1[hy]  (PyTorch flatten order is m*16+hy*4+hx).
    wf1 = jnp.transpose(fw1.reshape(100, 25, 4, 4), (2, 1, 3, 0)).reshape(4, 100, 100)
    wf1 = jnp.pad(wf1, ((0, 0), (0, 28), (0, 28)))
    wf2 = jnp.pad(fw2.T, ((0, 28), (0, 118)))

    b1 = jnp.pad(jnp.repeat(params["conv1_b"].astype(f32), 12), (0, 8)).reshape(1, 128)
    b2 = jnp.pad(jnp.repeat(params["conv2_b"].astype(f32), 4), (0, 28)).reshape(1, 128)
    bf1 = jnp.pad(params["fc1_b"].astype(f32), (0, 28)).reshape(1, 128)
    bf2 = jnp.pad(params["fc2_b"].astype(f32), (0, 118)).reshape(1, 128)

    return (t1[0], t1[1], t2[0], t2[1], wf1, wf2, b1, b2, bf1, bf2)


# ---------------------------------------------------------------------------
# Forward pass wrapper
# ---------------------------------------------------------------------------
def lenet5half_forward(img, prepped):
    """img: NCHW (B, 1, 28, 28) float32 -> logits (B, 10)."""
    t1e, t1o, t2e, t2o, wf1, wf2, b1, b2, bf1, bf2 = prepped
    B = img.shape[0]
    b_pad = ((B + TB - 1) // TB) * TB

    # Layout: (image_row, batch, image_col) with the column dim zero-padded to
    # 128 lanes so every MXU operand is lane-dense.
    x = jnp.transpose(img[:, 0, :, :].astype(jnp.float32), (1, 0, 2))   # (28, B, 28)
    x = jnp.pad(x, ((0, 0), (0, b_pad - B), (0, 128 - 28)))             # (28, b_pad, 128)

    grid = (b_pad // TB,)
    full3 = lambda i: (0, 0, 0)
    full2 = lambda i: (0, 0)

    flops = int(grid[0] * 2 * 128 * 128 * TB * (10 * 24 + 10 * 8 + 4 + 1))
    bytes_accessed = int(x.size * 4 + sum(int(p.size) * 4 for p in prepped)
                         + b_pad * 128 * 4)

    out = pl.pallas_call(
        _lenet_kernel,
        out_shape=jax.ShapeDtypeStruct((b_pad, 128), jnp.float32),
        grid=grid,
        in_specs=[
            pl.BlockSpec((28, TB, 128), lambda i: (0, i, 0)),   # input image tile
            pl.BlockSpec((5, 128, 128), full3),                 # conv1 Toeplitz (even ox)
            pl.BlockSpec((5, 128, 128), full3),                 # conv1 Toeplitz (odd ox)
            pl.BlockSpec((5, 128, 128), full3),                 # conv2 Toeplitz (even qx)
            pl.BlockSpec((5, 128, 128), full3),                 # conv2 Toeplitz (odd qx)
            pl.BlockSpec((4, 128, 128), full3),                 # fc1 (per pooled row hy)
            pl.BlockSpec((128, 128), full2),                    # fc2
            pl.BlockSpec((1, 128), full2),                      # conv1 bias
            pl.BlockSpec((1, 128), full2),                      # conv2 bias
            pl.BlockSpec((1, 128), full2),                      # fc1 bias
            pl.BlockSpec((1, 128), full2),                      # fc2 bias
        ],
        out_specs=pl.BlockSpec((TB, 128), lambda i: (i, 0)),
        compiler_params=pltpu.CompilerParams(
            dimension_semantics=("parallel",),
            vmem_limit_bytes=32 * 1024 * 1024,
        ),
        cost_estimate=pl.CostEstimate(
            flops=flops, transcendentals=0, bytes_accessed=bytes_accessed),
    )(x, t1e, t1o, t2e, t2o, wf1, wf2, b1, b2, bf1, bf2)

    return out[:B, :10]


# ---------------------------------------------------------------------------
# Parameter init (PyTorch layouts) and pure-JAX reference for verification
# ---------------------------------------------------------------------------
def init_params(key):
    ks = jax.random.split(key, 8)
    scale = 0.05
    return {
        "conv1_w": scale * jax.random.normal(ks[0], (10, 1, 5, 5), jnp.float32),
        "conv1_b": scale * jax.random.normal(ks[1], (10,), jnp.float32),
        "conv2_w": scale * jax.random.normal(ks[2], (25, 10, 5, 5), jnp.float32),
        "conv2_b": scale * jax.random.normal(ks[3], (25,), jnp.float32),
        "fc1_w": scale * jax.random.normal(ks[4], (100, 400), jnp.float32),
        "fc1_b": scale * jax.random.normal(ks[5], (100,), jnp.float32),
        "fc2_w": scale * jax.random.normal(ks[6], (10, 100), jnp.float32),
        "fc2_b": scale * jax.random.normal(ks[7], (10,), jnp.float32),
    }


def reference_forward(img, params):
    """Pure-JAX (XLA) LeNet5Half, used only to sanity-check the kernel."""
    hp = jax.lax.Precision.HIGHEST
    dn = ("NCHW", "OIHW", "NCHW")

    def pool(y):
        B, C, H, W = y.shape
        return y.reshape(B, C, H // 2, 2, W // 2, 2).max(axis=(3, 5))

    y = jax.lax.conv_general_dilated(img, params["conv1_w"], (1, 1), "VALID",
                                     dimension_numbers=dn, precision=hp)
    y = pool(jax.nn.relu(y + params["conv1_b"][None, :, None, None]))
    y = jax.lax.conv_general_dilated(y, params["conv2_w"], (1, 1), "VALID",
                                     dimension_numbers=dn, precision=hp)
    y = pool(jax.nn.relu(y + params["conv2_b"][None, :, None, None]))
    feat = y.reshape(y.shape[0], -1)
    y = jax.nn.relu(jnp.dot(feat, params["fc1_w"].T, precision=hp) + params["fc1_b"])
    return jnp.dot(y, params["fc2_w"].T, precision=hp) + params["fc2_b"]


if __name__ == "__main__":
    key = jax.random.PRNGKey(0)
    k_in, k_p = jax.random.split(key)
    # LeNet5Half implies 28x28 single-channel input (fc1 expects 4*4*25 = 400).
    img = jax.random.normal(k_in, (2, 1, 28, 28), jnp.float32)
    params = init_params(k_p)
    prepped = prepare_params(params)          # one-time weight repack, outside jit

    fwd = jax.jit(lenet5half_forward)
    logits = jax.block_until_ready(fwd(img, prepped))
    assert logits.shape == (2, 10)

    ref = jax.block_until_ready(reference_forward(img, params))
    max_err = float(jnp.max(jnp.abs(logits - ref)))
    assert max_err < 1e-2, f"kernel vs reference mismatch: max |err| = {max_err}"
    print("KERNEL_OK")
</pallas_src>

<mosaic_0001>
module attributes {stable_mosaic.version = 11 : i64} {
  func.func @_lenet_kernel(%arg0: i32, %arg1: memref<28x8x128xf32, #tpu.memory_space<vmem>>, %arg2: memref<5x128x128xf32, #tpu.memory_space<vmem>>, %arg3: memref<5x128x128xf32, #tpu.memory_space<vmem>>, %arg4: memref<5x128x128xf32, #tpu.memory_space<vmem>>, %arg5: memref<5x128x128xf32, #tpu.memory_space<vmem>>, %arg6: memref<4x128x128xf32, #tpu.memory_space<vmem>>, %arg7: memref<128x128xf32, #tpu.memory_space<vmem>>, %arg8: memref<1x128xf32, #tpu.memory_space<vmem>>, %arg9: memref<1x128xf32, #tpu.memory_space<vmem>>, %arg10: memref<1x128xf32, #tpu.memory_space<vmem>>, %arg11: memref<1x128xf32, #tpu.memory_space<vmem>>, %arg12: memref<8x128xf32, #tpu.memory_space<vmem>>) attributes {dimension_semantics = [#tpu.dimension_semantics<parallel>], iteration_bounds = array<i64: 1>, scalar_prefetch = 0 : i64, scratch_operands = 0 : i64, tpu.core_type = #tpu.core_type<tc>, window_params = [{transform_indices = @transform_0, window_bounds = array<i64: 28, 8, 128>}, {pipeline_mode = #tpu.pipeline_mode<synchronous>, transform_indices = @transform_1, window_bounds = array<i64: 5, 128, 128>}, {pipeline_mode = #tpu.pipeline_mode<synchronous>, transform_indices = @transform_2, window_bounds = array<i64: 5, 128, 128>}, {pipeline_mode = #tpu.pipeline_mode<synchronous>, transform_indices = @transform_3, window_bounds = array<i64: 5, 128, 128>}, {pipeline_mode = #tpu.pipeline_mode<synchronous>, transform_indices = @transform_4, window_bounds = array<i64: 5, 128, 128>}, {pipeline_mode = #tpu.pipeline_mode<synchronous>, transform_indices = @transform_5, window_bounds = array<i64: 4, 128, 128>}, {pipeline_mode = #tpu.pipeline_mode<synchronous>, transform_indices = @transform_6, window_bounds = array<i64: 128, 128>}, {pipeline_mode = #tpu.pipeline_mode<synchronous>, transform_indices = @transform_7, window_bounds = array<i64: 1, 128>}, {pipeline_mode = #tpu.pipeline_mode<synchronous>, transform_indices = @transform_8, window_bounds = array<i64: 1, 128>}, {pipeline_mode = #tpu.pipeline_mode<synchronous>, transform_indices = @transform_9, window_bounds = array<i64: 1, 128>}, {pipeline_mode = #tpu.pipeline_mode<synchronous>, transform_indices = @transform_10, window_bounds = array<i64: 1, 128>}, {transform_indices = @transform_11, window_bounds = array<i64: 8, 128>}]} {
    %c0 = arith.constant 0 : index
    %c0_0 = arith.constant 0 : index
    %c0_1 = arith.constant 0 : index
    %0 = vector.load %arg1[%c0, %c0_0, %c0_1] : memref<28x8x128xf32, #tpu.memory_space<vmem>>, vector<28x8x128xf32>
    %1 = vector.extract_strided_slice %0 {offsets = [0, 0, 0], sizes = [24, 8, 128], strides = [1, 1, 1]} : vector<28x8x128xf32> to vector<24x8x128xf32>
    %2 = vector.shape_cast %1 : vector<24x8x128xf32> to vector<192x128xf32>
    %3 = vector.extract_strided_slice %0 {offsets = [1, 0, 0], sizes = [24, 8, 128], strides = [1, 1, 1]} : vector<28x8x128xf32> to vector<24x8x128xf32>
    %4 = vector.shape_cast %3 : vector<24x8x128xf32> to vector<192x128xf32>
    %5 = vector.extract_strided_slice %0 {offsets = [2, 0, 0], sizes = [24, 8, 128], strides = [1, 1, 1]} : vector<28x8x128xf32> to vector<24x8x128xf32>
    %6 = vector.shape_cast %5 : vector<24x8x128xf32> to vector<192x128xf32>
    %7 = vector.extract_strided_slice %0 {offsets = [3, 0, 0], sizes = [24, 8, 128], strides = [1, 1, 1]} : vector<28x8x128xf32> to vector<24x8x128xf32>
    %8 = vector.shape_cast %7 : vector<24x8x128xf32> to vector<192x128xf32>
    %9 = vector.extract_strided_slice %0 {offsets = [4, 0, 0], sizes = [24, 8, 128], strides = [1, 1, 1]} : vector<28x8x128xf32> to vector<24x8x128xf32>
    %10 = vector.shape_cast %9 : vector<24x8x128xf32> to vector<192x128xf32>
    %c0_2 = arith.constant 0 : index
    %c0_3 = arith.constant 0 : index
    %c0_4 = arith.constant 0 : index
    %11 = vector.load %arg2[%c0_2, %c0_3, %c0_4] : memref<5x128x128xf32, #tpu.memory_space<vmem>>, vector<1x128x128xf32>
    %12 = vector.shape_cast %11 : vector<1x128x128xf32> to vector<128x128xf32>
    %cst = arith.constant dense<0.000000e+00> : vector<192x128xf32>
    %13 = tpu.matmul %2, %12, %cst {dimension_numbers = #tpu.dot_dimension_numbers<[1], [0], [0], [1], [0, 0, 1, 1], [], []>} : vector<192x128xf32>, vector<128x128xf32>, vector<192x128xf32> -> vector<192x128xf32>
    %c1 = arith.constant 1 : index
    %c0_5 = arith.constant 0 : index
    %c0_6 = arith.constant 0 : index
    %14 = vector.load %arg2[%c1, %c0_5, %c0_6] : memref<5x128x128xf32, #tpu.memory_space<vmem>>, vector<1x128x128xf32>
    %15 = vector.shape_cast %14 : vector<1x128x128xf32> to vector<128x128xf32>
    %cst_7 = arith.constant dense<0.000000e+00> : vector<192x128xf32>
    %16 = tpu.matmul %4, %15, %cst_7 {dimension_numbers = #tpu.dot_dimension_numbers<[1], [0], [0], [1], [0, 0, 1, 1], [], []>} : vector<192x128xf32>, vector<128x128xf32>, vector<192x128xf32> -> vector<192x128xf32>
    %17 = arith.addf %13, %16 : vector<192x128xf32>
    %c2 = arith.constant 2 : index
    %c0_8 = arith.constant 0 : index
    %c0_9 = arith.constant 0 : index
    %18 = vector.load %arg2[%c2, %c0_8, %c0_9] : memref<5x128x128xf32, #tpu.memory_space<vmem>>, vector<1x128x128xf32>
    %19 = vector.shape_cast %18 : vector<1x128x128xf32> to vector<128x128xf32>
    %cst_10 = arith.constant dense<0.000000e+00> : vector<192x128xf32>
    %20 = tpu.matmul %6, %19, %cst_10 {dimension_numbers = #tpu.dot_dimension_numbers<[1], [0], [0], [1], [0, 0, 1, 1], [], []>} : vector<192x128xf32>, vector<128x128xf32>, vector<192x128xf32> -> vector<192x128xf32>
    %21 = arith.addf %17, %20 : vector<192x128xf32>
    %c3 = arith.constant 3 : index
    %c0_11 = arith.constant 0 : index
    %c0_12 = arith.constant 0 : index
    %22 = vector.load %arg2[%c3, %c0_11, %c0_12] : memref<5x128x128xf32, #tpu.memory_space<vmem>>, vector<1x128x128xf32>
    %23 = vector.shape_cast %22 : vector<1x128x128xf32> to vector<128x128xf32>
    %cst_13 = arith.constant dense<0.000000e+00> : vector<192x128xf32>
    %24 = tpu.matmul %8, %23, %cst_13 {dimension_numbers = #tpu.dot_dimension_numbers<[1], [0], [0], [1], [0, 0, 1, 1], [], []>} : vector<192x128xf32>, vector<128x128xf32>, vector<192x128xf32> -> vector<192x128xf32>
    %25 = arith.addf %21, %24 : vector<192x128xf32>
    %c4 = arith.constant 4 : index
    %c0_14 = arith.constant 0 : index
    %c0_15 = arith.constant 0 : index
    %26 = vector.load %arg2[%c4, %c0_14, %c0_15] : memref<5x128x128xf32, #tpu.memory_space<vmem>>, vector<1x128x128xf32>
    %27 = vector.shape_cast %26 : vector<1x128x128xf32> to vector<128x128xf32>
    %cst_16 = arith.constant dense<0.000000e+00> : vector<192x128xf32>
    %28 = tpu.matmul %10, %27, %cst_16 {dimension_numbers = #tpu.dot_dimension_numbers<[1], [0], [0], [1], [0, 0, 1, 1], [], []>} : vector<192x128xf32>, vector<128x128xf32>, vector<192x128xf32> -> vector<192x128xf32>
    %29 = arith.addf %25, %28 : vector<192x128xf32>
    %c0_17 = arith.constant 0 : index
    %c0_18 = arith.constant 0 : index
    %c0_19 = arith.constant 0 : index
    %30 = vector.load %arg3[%c0_17, %c0_18, %c0_19] : memref<5x128x128xf32, #tpu.memory_space<vmem>>, vector<1x128x128xf32>
    %31 = vector.shape_cast %30 : vector<1x128x128xf32> to vector<128x128xf32>
    %cst_20 = arith.constant dense<0.000000e+00> : vector<192x128xf32>
    %32 = tpu.matmul %2, %31, %cst_20 {dimension_numbers = #tpu.dot_dimension_numbers<[1], [0], [0], [1], [0, 0, 1, 1], [], []>} : vector<192x128xf32>, vector<128x128xf32>, vector<192x128xf32> -> vector<192x128xf32>
    %c1_21 = arith.constant 1 : index
    %c0_22 = arith.constant 0 : index
    %c0_23 = arith.constant 0 : index
    %33 = vector.load %arg3[%c1_21, %c0_22, %c0_23] : memref<5x128x128xf32, #tpu.memory_space<vmem>>, vector<1x128x128xf32>
    %34 = vector.shape_cast %33 : vector<1x128x128xf32> to vector<128x128xf32>
    %cst_24 = arith.constant dense<0.000000e+00> : vector<192x128xf32>
    %35 = tpu.matmul %4, %34, %cst_24 {dimension_numbers = #tpu.dot_dimension_numbers<[1], [0], [0], [1], [0, 0, 1, 1], [], []>} : vector<192x128xf32>, vector<128x128xf32>, vector<192x128xf32> -> vector<192x128xf32>
    %36 = arith.addf %32, %35 : vector<192x128xf32>
    %c2_25 = arith.constant 2 : index
    %c0_26 = arith.constant 0 : index
    %c0_27 = arith.constant 0 : index
    %37 = vector.load %arg3[%c2_25, %c0_26, %c0_27] : memref<5x128x128xf32, #tpu.memory_space<vmem>>, vector<1x128x128xf32>
    %38 = vector.shape_cast %37 : vector<1x128x128xf32> to vector<128x128xf32>
    %cst_28 = arith.constant dense<0.000000e+00> : vector<192x128xf32>
    %39 = tpu.matmul %6, %38, %cst_28 {dimension_numbers = #tpu.dot_dimension_numbers<[1], [0], [0], [1], [0, 0, 1, 1], [], []>} : vector<192x128xf32>, vector<128x128xf32>, vector<192x128xf32> -> vector<192x128xf32>
    %40 = arith.addf %36, %39 : vector<192x128xf32>
    %c3_29 = arith.constant 3 : index
    %c0_30 = arith.constant 0 : index
    %c0_31 = arith.constant 0 : index
    %41 = vector.load %arg3[%c3_29, %c0_30, %c0_31] : memref<5x128x128xf32, #tpu.memory_space<vmem>>, vector<1x128x128xf32>
    %42 = vector.shape_cast %41 : vector<1x128x128xf32> to vector<128x128xf32>
    %cst_32 = arith.constant dense<0.000000e+00> : vector<192x128xf32>
    %43 = tpu.matmul %8, %42, %cst_32 {dimension_numbers = #tpu.dot_dimension_numbers<[1], [0], [0], [1], [0, 0, 1, 1], [], []>} : vector<192x128xf32>, vector<128x128xf32>, vector<192x128xf32> -> vector<192x128xf32>
    %44 = arith.addf %40, %43 : vector<192x128xf32>
    %c4_33 = arith.constant 4 : index
    %c0_34 = arith.constant 0 : index
    %c0_35 = arith.constant 0 : index
    %45 = vector.load %arg3[%c4_33, %c0_34, %c0_35] : memref<5x128x128xf32, #tpu.memory_space<vmem>>, vector<1x128x128xf32>
    %46 = vector.shape_cast %45 : vector<1x128x128xf32> to vector<128x128xf32>
    %cst_36 = arith.constant dense<0.000000e+00> : vector<192x128xf32>
    %47 = tpu.matmul %10, %46, %cst_36 {dimension_numbers = #tpu.dot_dimension_numbers<[1], [0], [0], [1], [0, 0, 1, 1], [], []>} : vector<192x128xf32>, vector<128x128xf32>, vector<192x128xf32> -> vector<192x128xf32>
    %48 = arith.addf %44, %47 : vector<192x128xf32>
    %49 = arith.maximumf %29, %48 : vector<192x128xf32>
    %c0_37 = arith.constant 0 : index
    %c0_38 = arith.constant 0 : index
    %50 = vector.load %arg8[%c0_37, %c0_38] : memref<1x128xf32, #tpu.memory_space<vmem>>, vector<1x128xf32>
    %51 = vector.broadcast %50 : vector<1x128xf32> to vector<192x128xf32>
    %52 = arith.addf %49, %51 : vector<192x128xf32>
    %cst_39 = arith.constant 0.000000e+00 : f32
    %53 = vector.broadcast %cst_39 : f32 to vector<192x128xf32>
    %54 = arith.maximumf %52, %53 : vector<192x128xf32>
    %55 = vector.shape_cast %54 : vector<192x128xf32> to vector<12x16x128xf32>
    %56 = vector.extract_strided_slice %55 {offsets = [0, 0, 0], sizes = [12, 8, 128], strides = [1, 1, 1]} : vector<12x16x128xf32> to vector<12x8x128xf32>
    %57 = vector.extract_strided_slice %55 {offsets = [0, 8, 0], sizes = [12, 8, 128], strides = [1, 1, 1]} : vector<12x16x128xf32> to vector<12x8x128xf32>
    %58 = arith.maximumf %56, %57 : vector<12x8x128xf32>
    %59 = vector.shape_cast %58 : vector<12x8x128xf32> to vector<96x128xf32>
    %60 = vector.extract_strided_slice %59 {offsets = [0, 0], sizes = [64, 128], strides = [1, 1]} : vector<96x128xf32> to vector<64x128xf32>
    %61 = vector.extract_strided_slice %59 {offsets = [8, 0], sizes = [64, 128], strides = [1, 1]} : vector<96x128xf32> to vector<64x128xf32>
    %62 = vector.extract_strided_slice %59 {offsets = [16, 0], sizes = [64, 128], strides = [1, 1]} : vector<96x128xf32> to vector<64x128xf32>
    %63 = vector.extract_strided_slice %59 {offsets = [24, 0], sizes = [64, 128], strides = [1, 1]} : vector<96x128xf32> to vector<64x128xf32>
    %64 = vector.extract_strided_slice %59 {offsets = [32, 0], sizes = [64, 128], strides = [1, 1]} : vector<96x128xf32> to vector<64x128xf32>
    %c0_40 = arith.constant 0 : index
    %c0_41 = arith.constant 0 : index
    %c0_42 = arith.constant 0 : index
    %65 = vector.load %arg4[%c0_40, %c0_41, %c0_42] : memref<5x128x128xf32, #tpu.memory_space<vmem>>, vector<1x128x128xf32>
    %66 = vector.shape_cast %65 : vector<1x128x128xf32> to vector<128x128xf32>
    %cst_43 = arith.constant dense<0.000000e+00> : vector<64x128xf32>
    %67 = tpu.matmul %60, %66, %cst_43 {dimension_numbers = #tpu.dot_dimension_numbers<[1], [0], [0], [1], [0, 0, 1, 1], [], []>} : vector<64x128xf32>, vector<128x128xf32>, vector<64x128xf32> -> vector<64x128xf32>
    %c1_44 = arith.constant 1 : index
    %c0_45 = arith.constant 0 : index
    %c0_46 = arith.constant 0 : index
    %68 = vector.load %arg4[%c1_44, %c0_45, %c0_46] : memref<5x128x128xf32, #tpu.memory_space<vmem>>, vector<1x128x128xf32>
    %69 = vector.shape_cast %68 : vector<1x128x128xf32> to vector<128x128xf32>
    %cst_47 = arith.constant dense<0.000000e+00> : vector<64x128xf32>
    %70 = tpu.matmul %61, %69, %cst_47 {dimension_numbers = #tpu.dot_dimension_numbers<[1], [0], [0], [1], [0, 0, 1, 1], [], []>} : vector<64x128xf32>, vector<128x128xf32>, vector<64x128xf32> -> vector<64x128xf32>
    %71 = arith.addf %67, %70 : vector<64x128xf32>
    %c2_48 = arith.constant 2 : index
    %c0_49 = arith.constant 0 : index
    %c0_50 = arith.constant 0 : index
    %72 = vector.load %arg4[%c2_48, %c0_49, %c0_50] : memref<5x128x128xf32, #tpu.memory_space<vmem>>, vector<1x128x128xf32>
    %73 = vector.shape_cast %72 : vector<1x128x128xf32> to vector<128x128xf32>
    %cst_51 = arith.constant dense<0.000000e+00> : vector<64x128xf32>
    %74 = tpu.matmul %62, %73, %cst_51 {dimension_numbers = #tpu.dot_dimension_numbers<[1], [0], [0], [1], [0, 0, 1, 1], [], []>} : vector<64x128xf32>, vector<128x128xf32>, vector<64x128xf32> -> vector<64x128xf32>
    %75 = arith.addf %71, %74 : vector<64x128xf32>
    %c3_52 = arith.constant 3 : index
    %c0_53 = arith.constant 0 : index
    %c0_54 = arith.constant 0 : index
    %76 = vector.load %arg4[%c3_52, %c0_53, %c0_54] : memref<5x128x128xf32, #tpu.memory_space<vmem>>, vector<1x128x128xf32>
    %77 = vector.shape_cast %76 : vector<1x128x128xf32> to vector<128x128xf32>
    %cst_55 = arith.constant dense<0.000000e+00> : vector<64x128xf32>
    %78 = tpu.matmul %63, %77, %cst_55 {dimension_numbers = #tpu.dot_dimension_numbers<[1], [0], [0], [1], [0, 0, 1, 1], [], []>} : vector<64x128xf32>, vector<128x128xf32>, vector<64x128xf32> -> vector<64x128xf32>
    %79 = arith.addf %75, %78 : vector<64x128xf32>
    %c4_56 = arith.constant 4 : index
    %c0_57 = arith.constant 0 : index
    %c0_58 = arith.constant 0 : index
    %80 = vector.load %arg4[%c4_56, %c0_57, %c0_58] : memref<5x128x128xf32, #tpu.memory_space<vmem>>, vector<1x128x128xf32>
    %81 = vector.shape_cast %80 : vector<1x128x128xf32> to vector<128x128xf32>
    %cst_59 = arith.constant dense<0.000000e+00> : vector<64x128xf32>
    %82 = tpu.matmul %64, %81, %cst_59 {dimension_numbers = #tpu.dot_dimension_numbers<[1], [0], [0], [1], [0, 0, 1, 1], [], []>} : vector<64x128xf32>, vector<128x128xf32>, vector<64x128xf32> -> vector<64x128xf32>
    %83 = arith.addf %79, %82 : vector<64x128xf32>
    %c0_60 = arith.constant 0 : index
    %c0_61 = arith.constant 0 : index
    %c0_62 = arith.constant 0 : index
    %84 = vector.load %arg5[%c0_60, %c0_61, %c0_62] : memref<5x128x128xf32, #tpu.memory_space<vmem>>, vector<1x128x128xf32>
    %85 = vector.shape_cast %84 : vector<1x128x128xf32> to vector<128x128xf32>
    %cst_63 = arith.constant dense<0.000000e+00> : vector<64x128xf32>
    %86 = tpu.matmul %60, %85, %cst_63 {dimension_numbers = #tpu.dot_dimension_numbers<[1], [0], [0], [1], [0, 0, 1, 1], [], []>} : vector<64x128xf32>, vector<128x128xf32>, vector<64x128xf32> -> vector<64x128xf32>
    %c1_64 = arith.constant 1 : index
    %c0_65 = arith.constant 0 : index
    %c0_66 = arith.constant 0 : index
    %87 = vector.load %arg5[%c1_64, %c0_65, %c0_66] : memref<5x128x128xf32, #tpu.memory_space<vmem>>, vector<1x128x128xf32>
    %88 = vector.shape_cast %87 : vector<1x128x128xf32> to vector<128x128xf32>
    %cst_67 = arith.constant dense<0.000000e+00> : vector<64x128xf32>
    %89 = tpu.matmul %61, %88, %cst_67 {dimension_numbers = #tpu.dot_dimension_numbers<[1], [0], [0], [1], [0, 0, 1, 1], [], []>} : vector<64x128xf32>, vector<128x128xf32>, vector<64x128xf32> -> vector<64x128xf32>
    %90 = arith.addf %86, %89 : vector<64x128xf32>
    %c2_68 = arith.constant 2 : index
    %c0_69 = arith.constant 0 : index
    %c0_70 = arith.constant 0 : index
    %91 = vector.load %arg5[%c2_68, %c0_69, %c0_70] : memref<5x128x128xf32, #tpu.memory_space<vmem>>, vector<1x128x128xf32>
    %92 = vector.shape_cast %91 : vector<1x128x128xf32> to vector<128x128xf32>
    %cst_71 = arith.constant dense<0.000000e+00> : vector<64x128xf32>
    %93 = tpu.matmul %62, %92, %cst_71 {dimension_numbers = #tpu.dot_dimension_numbers<[1], [0], [0], [1], [0, 0, 1, 1], [], []>} : vector<64x128xf32>, vector<128x128xf32>, vector<64x128xf32> -> vector<64x128xf32>
    %94 = arith.addf %90, %93 : vector<64x128xf32>
    %c3_72 = arith.constant 3 : index
    %c0_73 = arith.constant 0 : index
    %c0_74 = arith.constant 0 : index
    %95 = vector.load %arg5[%c3_72, %c0_73, %c0_74] : memref<5x128x128xf32, #tpu.memory_space<vmem>>, vector<1x128x128xf32>
    %96 = vector.shape_cast %95 : vector<1x128x128xf32> to vector<128x128xf32>
    %cst_75 = arith.constant dense<0.000000e+00> : vector<64x128xf32>
    %97 = tpu.matmul %63, %96, %cst_75 {dimension_numbers = #tpu.dot_dimension_numbers<[1], [0], [0], [1], [0, 0, 1, 1], [], []>} : vector<64x128xf32>, vector<128x128xf32>, vector<64x128xf32> -> vector<64x128xf32>
    %98 = arith.addf %94, %97 : vector<64x128xf32>
    %c4_76 = arith.constant 4 : index
    %c0_77 = arith.constant 0 : index
    %c0_78 = arith.constant 0 : index
    %99 = vector.load %arg5[%c4_76, %c0_77, %c0_78] : memref<5x128x128xf32, #tpu.memory_space<vmem>>, vector<1x128x128xf32>
    %100 = vector.shape_cast %99 : vector<1x128x128xf32> to vector<128x128xf32>
    %cst_79 = arith.constant dense<0.000000e+00> : vector<64x128xf32>
    %101 = tpu.matmul %64, %100, %cst_79 {dimension_numbers = #tpu.dot_dimension_numbers<[1], [0], [0], [1], [0, 0, 1, 1], [], []>} : vector<64x128xf32>, vector<128x128xf32>, vector<64x128xf32> -> vector<64x128xf32>
    %102 = arith.addf %98, %101 : vector<64x128xf32>
    %103 = arith.maximumf %83, %102 : vector<64x128xf32>
    %c0_80 = arith.constant 0 : index
    %c0_81 = arith.constant 0 : index
    %104 = vector.load %arg9[%c0_80, %c0_81] : memref<1x128xf32, #tpu.memory_space<vmem>>, vector<1x128xf32>
    %105 = vector.broadcast %104 : vector<1x128xf32> to vector<64x128xf32>
    %106 = arith.addf %103, %105 : vector<64x128xf32>
    %cst_82 = arith.constant 0.000000e+00 : f32
    %107 = vector.broadcast %cst_82 : f32 to vector<64x128xf32>
    %108 = arith.maximumf %106, %107 : vector<64x128xf32>
    %109 = vector.shape_cast %108 : vector<64x128xf32> to vector<4x16x128xf32>
    %110 = vector.extract_strided_slice %109 {offsets = [0, 0, 0], sizes = [4, 8, 128], strides = [1, 1, 1]} : vector<4x16x128xf32> to vector<4x8x128xf32>
    %111 = vector.extract_strided_slice %109 {offsets = [0, 8, 0], sizes = [4, 8, 128], strides = [1, 1, 1]} : vector<4x16x128xf32> to vector<4x8x128xf32>
    %112 = arith.maximumf %110, %111 : vector<4x8x128xf32>
    %113 = vector.shape_cast %112 : vector<4x8x128xf32> to vector<32x128xf32>
    %114 = vector.extract_strided_slice %113 {offsets = [0, 0], sizes = [8, 128], strides = [1, 1]} : vector<32x128xf32> to vector<8x128xf32>
    %115 = vector.extract_strided_slice %113 {offsets = [8, 0], sizes = [8, 128], strides = [1, 1]} : vector<32x128xf32> to vector<8x128xf32>
    %116 = vector.extract_strided_slice %113 {offsets = [16, 0], sizes = [8, 128], strides = [1, 1]} : vector<32x128xf32> to vector<8x128xf32>
    %117 = vector.extract_strided_slice %113 {offsets = [24, 0], sizes = [8, 128], strides = [1, 1]} : vector<32x128xf32> to vector<8x128xf32>
    %c0_83 = arith.constant 0 : index
    %c0_84 = arith.constant 0 : index
    %c0_85 = arith.constant 0 : index
    %118 = vector.load %arg6[%c0_83, %c0_84, %c0_85] : memref<4x128x128xf32, #tpu.memory_space<vmem>>, vector<1x128x128xf32>
    %119 = vector.shape_cast %118 : vector<1x128x128xf32> to vector<128x128xf32>
    %cst_86 = arith.constant dense<0.000000e+00> : vector<8x128xf32>
    %120 = tpu.matmul %114, %119, %cst_86 {dimension_numbers = #tpu.dot_dimension_numbers<[1], [0], [0], [1], [0, 0, 1, 1], [], []>} : vector<8x128xf32>, vector<128x128xf32>, vector<8x128xf32> -> vector<8x128xf32>
    %c1_87 = arith.constant 1 : index
    %c0_88 = arith.constant 0 : index
    %c0_89 = arith.constant 0 : index
    %121 = vector.load %arg6[%c1_87, %c0_88, %c0_89] : memref<4x128x128xf32, #tpu.memory_space<vmem>>, vector<1x128x128xf32>
    %122 = vector.shape_cast %121 : vector<1x128x128xf32> to vector<128x128xf32>
    %cst_90 = arith.constant dense<0.000000e+00> : vector<8x128xf32>
    %123 = tpu.matmul %115, %122, %cst_90 {dimension_numbers = #tpu.dot_dimension_numbers<[1], [0], [0], [1], [0, 0, 1, 1], [], []>} : vector<8x128xf32>, vector<128x128xf32>, vector<8x128xf32> -> vector<8x128xf32>
    %124 = arith.addf %120, %123 : vector<8x128xf32>
    %c2_91 = arith.constant 2 : index
    %c0_92 = arith.constant 0 : index
    %c0_93 = arith.constant 0 : index
    %125 = vector.load %arg6[%c2_91, %c0_92, %c0_93] : memref<4x128x128xf32, #tpu.memory_space<vmem>>, vector<1x128x128xf32>
    %126 = vector.shape_cast %125 : vector<1x128x128xf32> to vector<128x128xf32>
    %cst_94 = arith.constant dense<0.000000e+00> : vector<8x128xf32>
    %127 = tpu.matmul %116, %126, %cst_94 {dimension_numbers = #tpu.dot_dimension_numbers<[1], [0], [0], [1], [0, 0, 1, 1], [], []>} : vector<8x128xf32>, vector<128x128xf32>, vector<8x128xf32> -> vector<8x128xf32>
    %128 = arith.addf %124, %127 : vector<8x128xf32>
    %c3_95 = arith.constant 3 : index
    %c0_96 = arith.constant 0 : index
    %c0_97 = arith.constant 0 : index
    %129 = vector.load %arg6[%c3_95, %c0_96, %c0_97] : memref<4x128x128xf32, #tpu.memory_space<vmem>>, vector<1x128x128xf32>
    %130 = vector.shape_cast %129 : vector<1x128x128xf32> to vector<128x128xf32>
    %cst_98 = arith.constant dense<0.000000e+00> : vector<8x128xf32>
    %131 = tpu.matmul %117, %130, %cst_98 {dimension_numbers = #tpu.dot_dimension_numbers<[1], [0], [0], [1], [0, 0, 1, 1], [], []>} : vector<8x128xf32>, vector<128x128xf32>, vector<8x128xf32> -> vector<8x128xf32>
    %132 = arith.addf %128, %131 : vector<8x128xf32>
    %c0_99 = arith.constant 0 : index
    %c0_100 = arith.constant 0 : index
    %133 = vector.load %arg10[%c0_99, %c0_100] : memref<1x128xf32, #tpu.memory_space<vmem>>, vector<1x128xf32>
    %134 = vector.broadcast %133 : vector<1x128xf32> to vector<8x128xf32>
    %135 = arith.addf %132, %134 : vector<8x128xf32>
    %cst_101 = arith.constant 0.000000e+00 : f32
    %136 = vector.broadcast %cst_101 : f32 to vector<8x128xf32>
    %137 = arith.maximumf %135, %136 : vector<8x128xf32>
    %c0_102 = arith.constant 0 : index
    %c0_103 = arith.constant 0 : index
    %138 = vector.load %arg7[%c0_102, %c0_103] : memref<128x128xf32, #tpu.memory_space<vmem>>, vector<128x128xf32>
    %cst_104 = arith.constant dense<0.000000e+00> : vector<8x128xf32>
    %139 = tpu.matmul %137, %138, %cst_104 {dimension_numbers = #tpu.dot_dimension_numbers<[1], [0], [0], [1], [0, 0, 1, 1], [], []>} : vector<8x128xf32>, vector<128x128xf32>, vector<8x128xf32> -> vector<8x128xf32>
    %c0_105 = arith.constant 0 : index
    %c0_106 = arith.constant 0 : index
    %140 = vector.load %arg11[%c0_105, %c0_106] : memref<1x128xf32, #tpu.memory_space<vmem>>, vector<1x128xf32>
    %141 = vector.broadcast %140 : vector<1x128xf32> to vector<8x128xf32>
    %142 = arith.addf %139, %141 : vector<8x128xf32>
    %c0_107 = arith.constant 0 : index
    %c0_108 = arith.constant 0 : index
    %143 = vector.load %arg12[%c0_107, %c0_108] : memref<8x128xf32, #tpu.memory_space<vmem>>, vector<8x128xf32>
    tpu.vector_store %arg12[%c0_107, %c0_108], %142 {strides = array<i32>} : memref<8x128xf32, #tpu.memory_space<vmem>>, vector<8x128xf32>,
    return
  }
  func.func @transform_0(%arg0: i32) -> (i32, i32, i32) {
    %c0_i32 = arith.constant 0 : i32
    %c0_i32_0 = arith.constant 0 : i32
    %c0_i32_1 = arith.constant 0 : i32
    return %c0_i32, %arg0, %c0_i32_0 : i32, i32, i32
  }
  func.func @transform_1(%arg0: i32) -> (i32, i32, i32) {
    %c0_i32 = arith.constant 0 : i32
    %c0_i32_0 = arith.constant 0 : i32
    %c0_i32_1 = arith.constant 0 : i32
    %c0_i32_2 = arith.constant 0 : i32
    return %c0_i32, %c0_i32_0, %c0_i32_1 : i32, i32, i32
  }
  func.func @transform_2(%arg0: i32) -> (i32, i32, i32) {
    %c0_i32 = arith.constant 0 : i32
    %c0_i32_0 = arith.constant 0 : i32
    %c0_i32_1 = arith.constant 0 : i32
    %c0_i32_2 = arith.constant 0 : i32
    return %c0_i32, %c0_i32_0, %c0_i32_1 : i32, i32, i32
  }
  func.func @transform_3(%arg0: i32) -> (i32, i32, i32) {
    %c0_i32 = arith.constant 0 : i32
    %c0_i32_0 = arith.constant 0 : i32
    %c0_i32_1 = arith.constant 0 : i32
    %c0_i32_2 = arith.constant 0 : i32
    return %c0_i32, %c0_i32_0, %c0_i32_1 : i32, i32, i32
  }
  func.func @transform_4(%arg0: i32) -> (i32, i32, i32) {
    %c0_i32 = arith.constant 0 : i32
    %c0_i32_0 = arith.constant 0 : i32
    %c0_i32_1 = arith.constant 0 : i32
    %c0_i32_2 = arith.constant 0 : i32
    return %c0_i32, %c0_i32_0, %c0_i32_1 : i32, i32, i32
  }
  func.func @transform_5(%arg0: i32) -> (i32, i32, i32) {
    %c0_i32 = arith.constant 0 : i32
    %c0_i32_0 = arith.constant 0 : i32
    %c0_i32_1 = arith.constant 0 : i32
    %c0_i32_2 = arith.constant 0 : i32
    return %c0_i32, %c0_i32_0, %c0_i32_1 : i32, i32, i32
  }
  func.func @transform_6(%arg0: i32) -> (i32, i32) {
    %c0_i32 = arith.constant 0 : i32
    %c0_i32_0 = arith.constant 0 : i32
    %c0_i32_1 = arith.constant 0 : i32
    return %c0_i32, %c0_i32_0 : i32, i32
  }
  func.func @transform_7(%arg0: i32) -> (i32, i32) {
    %c0_i32 = arith.constant 0 : i32
    %c0_i32_0 = arith.constant 0 : i32
    %c0_i32_1 = arith.constant 0 : i32
    return %c0_i32, %c0_i32_0 : i32, i32
  }
  func.func @transform_8(%arg0: i32) -> (i32, i32) {
    %c0_i32 = arith.constant 0 : i32
    %c0_i32_0 = arith.constant 0 : i32
    %c0_i32_1 = arith.constant 0 : i32
    return %c0_i32, %c0_i32_0 : i32, i32
  }
  func.func @transform_9(%arg0: i32) -> (i32, i32) {
    %c0_i32 = arith.constant 0 : i32
    %c0_i32_0 = arith.constant 0 : i32
    %c0_i32_1 = arith.constant 0 : i32
    return %c0_i32, %c0_i32_0 : i32, i32
  }
  func.func @transform_10(%arg0: i32) -> (i32, i32) {
    %c0_i32 = arith.constant 0 : i32
    %c0_i32_0 = arith.constant 0 : i32
    %c0_i32_1 = arith.constant 0 : i32
    return %c0_i32, %c0_i32_0 : i32, i32
  }
  func.func @transform_11(%arg0: i32) -> (i32, i32) {
    %c0_i32 = arith.constant 0 : i32
    %c0_i32_0 = arith.constant 0 : i32
    return %arg0, %c0_i32 : i32, i32
  }
}

</mosaic_0001>

<llo_original>
// kernel: lenet5half_forward.1
$region0: #{lenet5half_forward.1}
  #allocation0 [shape = 'u32[]', space=smem, size = 0x4, offset = 0x4, fixed_abs, tag = 'smem constant byte address 0x4 - core index']
  #allocation1 [shape = 'u32[72,128]{1,0:T(1,128)}', space=vmem, size = 0x9000, scoped, tag = 'internal scratch']
  %s0 = inlined_call_operand.vmem [shape: f32[28,8,128], index: 0, kind: input, shape index: {}]
  %s1 = inlined_call_operand.hbm [shape: f32[5,128,128], index: 1, kind: input, shape index: {}]
  %s2 = inlined_call_operand.hbm [shape: f32[5,128,128], index: 2, kind: input, shape index: {}]
  %s3 = inlined_call_operand.hbm [shape: f32[5,128,128], index: 3, kind: input, shape index: {}]
  %s4 = inlined_call_operand.hbm [shape: f32[5,128,128], index: 4, kind: input, shape index: {}]
  %s5 = inlined_call_operand.hbm [shape: f32[4,128,128], index: 5, kind: input, shape index: {}]
  %s6 = inlined_call_operand.vmem [shape: f32[128,128], index: 6, kind: input, shape index: {}]
  %s7 = inlined_call_operand.vmem [shape: f32[1,128], index: 7, kind: input, shape index: {}]
  %s8 = inlined_call_operand.vmem [shape: f32[1,128], index: 8, kind: input, shape index: {}]
  %s9 = inlined_call_operand.vmem [shape: f32[1,128], index: 9, kind: input, shape index: {}]
  %s10 = inlined_call_operand.vmem [shape: f32[1,128], index: 10, kind: input, shape index: {}]
  %s11 = inlined_call_operand.vmem [shape: f32[8,128], index: 11, kind: output, shape index: {}]
  %s12 = sld [smem:[#allocation0]]
  $region74: #{lenet5half_forward.1} parent=0
    _
  %s14 = ssub.s32 1, %s12
  %s15 = scalar_select 0, %s14, %s12
  $region1: #{lenet5half_forward.1} parent=0
    #allocation2 [shape = 'u8[327680]{0}', space=vmem, size = 0x50000, scoped, tag = 'input window, operand 1, single buffered']
    #allocation3 [shape = 's32[1]{0}', space=sflag, size = 0x4, scoped, tag = 'scoped memory for lenet5half_forward.1']
    #allocation4 [shape = 'u8[327680]{0}', space=vmem, size = 0x50000, scoped, tag = 'input window, operand 2, single buffered']
    #allocation5 [shape = 's32[1]{0}', space=sflag, size = 0x4, scoped, tag = 'scoped memory for lenet5half_forward.1']
    #allocation6 [shape = 'u8[327680]{0}', space=vmem, size = 0x50000, scoped, tag = 'input window, operand 3, single buffered']
    #allocation7 [shape = 'u8[327680]{0}', space=vmem, size = 0x50000, scoped, tag = 'input window, operand 4, single buffered']
    #allocation8 [shape = 's32[1]{0}', space=sflag, size = 0x4, scoped, tag = 'scoped memory for lenet5half_forward.1']
    #allocation9 [shape = 'u8[262144]{0}', space=vmem, size = 0x40000, scoped, tag = 'input window, operand 5, single buffered']
    %16 = vsyncpa [#allocation3], 0
    %17 = vsyncpa [#allocation5], 0
    %18 = vsyncpa [#allocation8], 0
    // Predicated region
    $region2: #{lenet5half_forward.1} parent=1 // pred_check
      _
    $region3: #{lenet5half_forward.1} parent=1 // pred_check_branch
      %20 = sbr.rel (0) target = $region5
    $region4: #{lenet5half_forward.1} parent=1 // pred_region
      _
    $region5: #{lenet5half_forward.1} parent=1 // pred_fallthru
      _
    // Predicated region
    $region6: #{lenet5half_forward.1} parent=1 // pred_check
      _
    $region7: #{lenet5half_forward.1} parent=1 // pred_check_branch
      %22 = sbr.rel (0) target = $region9
    $region8: #{lenet5half_forward.1} parent=1 // pred_region
      %24 = vsyncadd [#allocation3], 0
      %s25 = sshll.u32 %s1, 4
      %s26 = int_to_ptr.hbm [resolvable:$true] %s25
      %s27 = sshll.u32 [#allocation2], 4
      %s28 = int_to_ptr.vmem [resolvable:$true] %s27
      %33 = dma.hbm_to_vmem [thread:$0]  %s26, 10240, %s28, [#allocation3], 128, 128, 8
    $region9: #{lenet5half_forward.1} parent=1 // pred_fallthru
      _
    // Predicated region
    $region10: #{lenet5half_forward.1} parent=1 // pred_check
      _
    $region11: #{lenet5half_forward.1} parent=1 // pred_check_branch
      %35 = sbr.rel (0) target = $region13
    $region12: #{lenet5half_forward.1} parent=1 // pred_region
      %37 = vsyncadd [#allocation5], 0
      %s38 = sshll.u32 %s2, 4
      %s39 = int_to_ptr.hbm [resolvable:$true] %s38
      %s40 = sshll.u32 [#allocation4], 4
      %s41 = int_to_ptr.vmem [resolvable:$true] %s40
      %46 = dma.hbm_to_vmem [thread:$0]  %s39, 10240, %s41, [#allocation5], 128, 128, 8
    $region13: #{lenet5half_forward.1} parent=1 // pred_fallthru
      _
    // Predicated region
    $region14: #{lenet5half_forward.1} parent=1 // pred_check
      _
    $region15: #{lenet5half_forward.1} parent=1 // pred_check_branch
      %48 = sbr.rel (0) target = $region17
    $region16: #{lenet5half_forward.1} parent=1 // pred_region
      %50 = vsyncadd [#allocation5], 0
      %s51 = sshll.u32 %s3, 4
      %s52 = int_to_ptr.hbm [resolvable:$true] %s51
      %s53 = sshll.u32 [#allocation6], 4
      %s54 = int_to_ptr.vmem [resolvable:$true] %s53
      %59 = dma.hbm_to_vmem [thread:$0]  %s52, 10240, %s54, [#allocation5], 128, 128, 8
    $region17: #{lenet5half_forward.1} parent=1 // pred_fallthru
      _
    // Predicated region
    $region18: #{lenet5half_forward.1} parent=1 // pred_check
      _
    $region19: #{lenet5half_forward.1} parent=1 // pred_check_branch
      %61 = sbr.rel (0) target = $region21
    $region20: #{lenet5half_forward.1} parent=1 // pred_region
      %63 = vsyncadd [#allocation8], 0
      %s64 = sshll.u32 %s4, 4
      %s65 = int_to_ptr.hbm [resolvable:$true] %s64
      %s66 = sshll.u32 [#allocation7], 4
      %s67 = int_to_ptr.vmem [resolvable:$true] %s66
      %72 = dma.hbm_to_vmem [thread:$0]  %s65, 10240, %s67, [#allocation8], 128, 128, 8
    $region21: #{lenet5half_forward.1} parent=1 // pred_fallthru
      _
    // Predicated region
    $region22: #{lenet5half_forward.1} parent=1 // pred_check
      _
    $region23: #{lenet5half_forward.1} parent=1 // pred_check_branch
      %74 = sbr.rel (0) target = $region25
    $region24: #{lenet5half_forward.1} parent=1 // pred_region
      %76 = vsyncadd [#allocation8], 0
      %s77 = sshll.u32 %s5, 4
      %s78 = int_to_ptr.hbm [resolvable:$true] %s77
      %s79 = sshll.u32 [#allocation9], 4
      %s80 = int_to_ptr.vmem [resolvable:$true] %s79
      %85 = dma.hbm_to_vmem [thread:$0]  %s78, 8192, %s80, [#allocation8], 128, 128, 8
    $region25: #{lenet5half_forward.1} parent=1 // pred_fallthru
      _
    // Predicated region
    $region26: #{lenet5half_forward.1} parent=1 // pred_check
      _
    $region27: #{lenet5half_forward.1} parent=1 // pred_check_branch
      %87 = sbr.rel (0) target = $region29
    $region28: #{lenet5half_forward.1} parent=1 // pred_region
      _
    $region29: #{lenet5half_forward.1} parent=1 // pred_fallthru
      _
    // Predicated region
    $region30: #{lenet5half_forward.1} parent=1 // pred_check
      _
    $region31: #{lenet5half_forward.1} parent=1 // pred_check_branch
      %89 = sbr.rel (0) target = $region33
    $region32: #{lenet5half_forward.1} parent=1 // pred_region
      _
    $region33: #{lenet5half_forward.1} parent=1 // pred_fallthru
      _
    // Predicated region
    $region34: #{lenet5half_forward.1} parent=1 // pred_check
      _
    $region35: #{lenet5half_forward.1} parent=1 // pred_check_branch
      %91 = sbr.rel (0) target = $region37
    $region36: #{lenet5half_forward.1} parent=1 // pred_region
      _
    $region37: #{lenet5half_forward.1} parent=1 // pred_fallthru
      _
    // Predicated region
    $region38: #{lenet5half_forward.1} parent=1 // pred_check
      _
    $region39: #{lenet5half_forward.1} parent=1 // pred_check_branch
      %93 = sbr.rel (0) target = $region41
    $region40: #{lenet5half_forward.1} parent=1 // pred_region
      _
    $region41: #{lenet5half_forward.1} parent=1 // pred_fallthru
      _
    // Predicated region
    $region42: #{lenet5half_forward.1} parent=1 // pred_check
      _
    $region43: #{lenet5half_forward.1} parent=1 // pred_check_branch
      %95 = sbr.rel (0) target = $region45
    $region44: #{lenet5half_forward.1} parent=1 // pred_region
      _
    $region45: #{lenet5half_forward.1} parent=1 // pred_fallthru
      _
    // Predicated region
    $region46: #{lenet5half_forward.1} parent=1 // pred_check
      _
    $region47: #{lenet5half_forward.1} parent=1 // pred_check_branch
      %97 = sbr.rel (0) target = $region49
    $region48: #{lenet5half_forward.1} parent=1 // pred_region
      %99 = dma.done [#allocation3], 10240
    $region49: #{lenet5half_forward.1} parent=1 // pred_fallthru
      _
    // Predicated region
    $region50: #{lenet5half_forward.1} parent=1 // pred_check
      _
    $region51: #{lenet5half_forward.1} parent=1 // pred_check_branch
      %101 = sbr.rel (0) target = $region53
    $region52: #{lenet5half_forward.1} parent=1 // pred_region
      %103 = dma.done [#allocation5], 10240
    $region53: #{lenet5half_forward.1} parent=1 // pred_fallthru
      _
    // Predicated region
    $region54: #{lenet5half_forward.1} parent=1 // pred_check
      _
    $region55: #{lenet5half_forward.1} parent=1 // pred_check_branch
      %105 = sbr.rel (0) target = $region57
    $region56: #{lenet5half_forward.1} parent=1 // pred_region
      %107 = dma.done [#allocation5], 10240
    $region57: #{lenet5half_forward.1} parent=1 // pred_fallthru
      _
    // Predicated region
    $region58: #{lenet5half_forward.1} parent=1 // pred_check
      _
    $region59: #{lenet5half_forward.1} parent=1 // pred_check_branch
      %109 = sbr.rel (0) target = $region61
    $region60: #{lenet5half_forward.1} parent=1 // pred_region
      %111 = dma.done [#allocation8], 10240
    $region61: #{lenet5half_forward.1} parent=1 // pred_fallthru
      _
    // Predicated region
    $region62: #{lenet5half_forward.1} parent=1 // pred_check
      _
    $region63: #{lenet5half_forward.1} parent=1 // pred_check_branch
      %113 = sbr.rel (0) target = $region65
    $region64: #{lenet5half_forward.1} parent=1 // pred_region
      %115 = dma.done [#allocation8], 8192
    $region65: #{lenet5half_forward.1} parent=1 // pred_fallthru
      _
    %v116 = vld [vmem:[%s0] sm:$0xff]
    %v117 = vld [vmem:[%s0 + $0x8] sm:$0xff]
    %v118 = vld [vmem:[%s0 + $0x10] sm:$0xff]
    %v119 = vld [vmem:[%s0 + $0x18] sm:$0xff]
    %v120 = vld [vmem:[%s0 + $0x20] sm:$0xff]
    %v121 = vld [vmem:[%s0 + $0x28] sm:$0xff]
    %v122 = vld [vmem:[%s0 + $0x30] sm:$0xff]
    %v123 = vld [vmem:[%s0 + $0x38] sm:$0xff]
    %v124 = vld [vmem:[%s0 + $0x40] sm:$0xff]
    %v125 = vld [vmem:[%s0 + $0x48] sm:$0xff]
    %v126 = vld [vmem:[%s0 + $0x50] sm:$0xff]
    %v127 = vld [vmem:[%s0 + $0x58] sm:$0xff]
    %v128 = vld [vmem:[%s0 + $0x60] sm:$0xff]
    %v129 = vld [vmem:[%s0 + $0x68] sm:$0xff]
    %v130 = vld [vmem:[%s0 + $0x70] sm:$0xff]
    %v131 = vld [vmem:[%s0 + $0x78] sm:$0xff]
    %v132 = vld [vmem:[%s0 + $0x80] sm:$0xff]
    %v133 = vld [vmem:[%s0 + $0x88] sm:$0xff]
    %v134 = vld [vmem:[%s0 + $0x90] sm:$0xff]
    %v135 = vld [vmem:[%s0 + $0x98] sm:$0xff]
    %v136 = vld [vmem:[%s0 + $0xa0] sm:$0xff]
    %v137 = vld [vmem:[%s0 + $0xa8] sm:$0xff]
    %v138 = vld [vmem:[%s0 + $0xb0] sm:$0xff]
    %v139 = vld [vmem:[%s0 + $0xb8] sm:$0xff]
    %v140 = vld [vmem:[%s0 + $0xc0] sm:$0xff]
    %v141 = vld [vmem:[%s0 + $0xc8] sm:$0xff]
    %v142 = vld [vmem:[%s0 + $0xd0] sm:$0xff]
    %v143 = vld [vmem:[%s0 + $0xd8] sm:$0xff]
    %v144 = vld [vmem:[#allocation2] sm:$0xff]
    %v145 = vld [vmem:[#allocation2 + $0x8] sm:$0xff]
    %v146 = vld [vmem:[#allocation2 + $0x10] sm:$0xff]
    %v147 = vld [vmem:[#allocation2 + $0x18] sm:$0xff]
    %v148 = vld [vmem:[#allocation2 + $0x20] sm:$0xff]
    %v149 = vld [vmem:[#allocation2 + $0x28] sm:$0xff]
    %v150 = vld [vmem:[#allocation2 + $0x30] sm:$0xff]
    %v151 = vld [vmem:[#allocation2 + $0x38] sm:$0xff]
    %v152 = vld [vmem:[#allocation2 + $0x40] sm:$0xff]
    %v153 = vld [vmem:[#allocation2 + $0x48] sm:$0xff]
    %v154 = vld [vmem:[#allocation2 + $0x50] sm:$0xff]
    %v155 = vld [vmem:[#allocation2 + $0x58] sm:$0xff]
    %v156 = vld [vmem:[#allocation2 + $0x60] sm:$0xff]
    %v157 = vld [vmem:[#allocation2 + $0x68] sm:$0xff]
    %v158 = vld [vmem:[#allocation2 + $0x70] sm:$0xff]
    %v159 = vld [vmem:[#allocation2 + $0x78] sm:$0xff]
    %s160 = scalar_lea.vmem [#allocation2], 128
    %v161 = vld [vmem:[%s160] sm:$0xff]
    %v162 = vld [vmem:[%s160 + $0x8] sm:$0xff]
    %v163 = vld [vmem:[%s160 + $0x10] sm:$0xff]
    %v164 = vld [vmem:[%s160 + $0x18] sm:$0xff]
    %v165 = vld [vmem:[%s160 + $0x20] sm:$0xff]
    %v166 = vld [vmem:[%s160 + $0x28] sm:$0xff]
    %v167 = vld [vmem:[%s160 + $0x30] sm:$0xff]
    %v168 = vld [vmem:[%s160 + $0x38] sm:$0xff]
    %v169 = vld [vmem:[%s160 + $0x40] sm:$0xff]
    %v170 = vld [vmem:[%s160 + $0x48] sm:$0xff]
    %v171 = vld [vmem:[%s160 + $0x50] sm:$0xff]
    %v172 = vld [vmem:[%s160 + $0x58] sm:$0xff]
    %v173 = vld [vmem:[%s160 + $0x60] sm:$0xff]
    %v174 = vld [vmem:[%s160 + $0x68] sm:$0xff]
    %v175 = vld [vmem:[%s160 + $0x70] sm:$0xff]
    %v176 = vld [vmem:[%s160 + $0x78] sm:$0xff]
    %177 = vmatpush.msra.mxu0 %v176
    %178 = vmatpush.msra.mxu0 %v175
    %179 = vmatpush.msra.mxu0 %v174
    %180 = vmatpush.msra.mxu0 %v173
    %181 = vmatpush.msra.mxu0 %v172
    %182 = vmatpush.msra.mxu0 %v171
    %183 = vmatpush.msra.mxu0 %v170
    %184 = vmatpush.msra.mxu0 %v169
    %185 = vmatpush.msra.mxu0 %v168
    %186 = vmatpush.msra.mxu0 %v167
    %187 = vmatpush.msra.mxu0 %v166
    %188 = vmatpush.msra.mxu0 %v165
    %189 = vmatpush.msra.mxu0 %v164
    %190 = vmatpush.msra.mxu0 %v163
    %191 = vmatpush.msra.mxu0 %v162
    %192 = vmatpush.msra.mxu0 %v161
    %193 = vmatmul.f32.gmra.mxu0 %v117
    %v194 = vpop.f32.mrf.mxu0
    %v195 = vadd.f32 0.0, %v194
    %196 = vmatmul.f32.gmra.mxu0 %v118
    %v197 = vpop.f32.mrf.mxu0
    %v198 = vadd.f32 0.0, %v197
    %199 = vmatmul.f32.gmra.mxu0 %v119
    %v200 = vpop.f32.mrf.mxu0
    %v201 = vadd.f32 0.0, %v200
    %202 = vmatmul.f32.gmra.mxu0 %v120
    %v203 = vpop.f32.mrf.mxu0
    %v204 = vadd.f32 0.0, %v203
    %205 = vmatmul.f32.gmra.mxu0 %v121
    %v206 = vpop.f32.mrf.mxu0
    %v207 = vadd.f32 0.0, %v206
    %208 = vmatmul.f32.gmra.mxu0 %v122
    %v209 = vpop.f32.mrf.mxu0
    %v210 = vadd.f32 0.0, %v209
    %211 = vmatmul.f32.gmra.mxu0 %v123
    %v212 = vpop.f32.mrf.mxu0
    %v213 = vadd.f32 0.0, %v212
    %214 = vmatmul.f32.gmra.mxu0 %v124
    %v215 = vpop.f32.mrf.mxu0
    %v216 = vadd.f32 0.0, %v215
    %217 = vmatmul.f32.gmra.mxu0 %v125
    %v218 = vpop.f32.mrf.mxu0
    %v219 = vadd.f32 0.0, %v218
    %220 = vmatmul.f32.gmra.mxu0 %v126
    %v221 = vpop.f32.mrf.mxu0
    %v222 = vadd.f32 0.0, %v221
    %223 = vmatmul.f32.gmra.mxu0 %v127
    %v224 = vpop.f32.mrf.mxu0
    %v225 = vadd.f32 0.0, %v224
    %226 = vmatmul.f32.gmra.mxu0 %v128
    %v227 = vpop.f32.mrf.mxu0
    %v228 = vadd.f32 0.0, %v227
    %229 = vmatmul.f32.gmra.mxu0 %v129
    %v230 = vpop.f32.mrf.mxu0
    %v231 = vadd.f32 0.0, %v230
    %232 = vmatmul.f32.gmra.mxu0 %v130
    %v233 = vpop.f32.mrf.mxu0
    %v234 = vadd.f32 0.0, %v233
    %235 = vmatmul.f32.gmra.mxu0 %v131
    %v236 = vpop.f32.mrf.mxu0
    %v237 = vadd.f32 0.0, %v236
    %238 = vmatmul.f32.gmra.mxu0 %v132
    %v239 = vpop.f32.mrf.mxu0
    %v240 = vadd.f32 0.0, %v239
    %241 = vmatmul.f32.gmra.mxu0 %v133
    %v242 = vpop.f32.mrf.mxu0
    %v243 = vadd.f32 0.0, %v242
    %244 = vmatmul.f32.gmra.mxu0 %v134
    %v245 = vpop.f32.mrf.mxu0
    %v246 = vadd.f32 0.0, %v245
    %247 = vmatmul.f32.gmra.mxu0 %v135
    %v248 = vpop.f32.mrf.mxu0
    %v249 = vadd.f32 0.0, %v248
    %250 = vmatmul.f32.gmra.mxu0 %v136
    %v251 = vpop.f32.mrf.mxu0
    %v252 = vadd.f32 0.0, %v251
    %253 = vmatmul.f32.gmra.mxu0 %v137
    %v254 = vpop.f32.mrf.mxu0
    %v255 = vadd.f32 0.0, %v254
    %256 = vmatmul.f32.gmra.mxu0 %v138
    %v257 = vpop.f32.mrf.mxu0
    %v258 = vadd.f32 0.0, %v257
    %259 = vmatmul.f32.gmra.mxu0 %v139
    %v260 = vpop.f32.mrf.mxu0
    %v261 = vadd.f32 0.0, %v260
    %262 = vmatmul.f32.gmra.mxu0 %v140
    %v263 = vpop.f32.mrf.mxu0
    %v264 = vadd.f32 0.0, %v263
    %265 = vdwg.mxu0
    %266 = vmatpush.msra.mxu0 %v159
    %267 = vmatpush.msra.mxu0 %v158
    %268 = vmatpush.msra.mxu0 %v157
    %269 = vmatpush.msra.mxu0 %v156
    %270 = vmatpush.msra.mxu0 %v155
    %271 = vmatpush.msra.mxu0 %v154
    %272 = vmatpush.msra.mxu0 %v153
    %273 = vmatpush.msra.mxu0 %v152
    %274 = vmatpush.msra.mxu0 %v151
    %275 = vmatpush.msra.mxu0 %v150
    %276 = vmatpush.msra.mxu0 %v149
    %277 = vmatpush.msra.mxu0 %v148
    %278 = vmatpush.msra.mxu0 %v147
    %279 = vmatpush.msra.mxu0 %v146
    %280 = vmatpush.msra.mxu0 %v145
    %281 = vmatpush.msra.mxu0 %v144
    %282 = vmatmul.f32.gmra.mxu0 %v116
    %v283 = vpop.f32.mrf.mxu0
    %v284 = vadd.f32 %v195, %v283
    %285 = vmatmul.f32.gmra.mxu0 %v117
    %v286 = vpop.f32.mrf.mxu0
    %v287 = vadd.f32 %v198, %v286
    %288 = vmatmul.f32.gmra.mxu0 %v118
    %v289 = vpop.f32.mrf.mxu0
    %v290 = vadd.f32 %v201, %v289
    %291 = vmatmul.f32.gmra.mxu0 %v119
    %v292 = vpop.f32.mrf.mxu0
    %v293 = vadd.f32 %v204, %v292
    %294 = vmatmul.f32.gmra.mxu0 %v120
    %v295 = vpop.f32.mrf.mxu0
    %v296 = vadd.f32 %v207, %v295
    %297 = vmatmul.f32.gmra.mxu0 %v121
    %v298 = vpop.f32.mrf.mxu0
    %v299 = vadd.f32 %v210, %v298
    %300 = vmatmul.f32.gmra.mxu0 %v122
    %v301 = vpop.f32.mrf.mxu0
    %v302 = vadd.f32 %v213, %v301
    %303 = vmatmul.f32.gmra.mxu0 %v123
    %v304 = vpop.f32.mrf.mxu0
    %v305 = vadd.f32 %v216, %v304
    %306 = vmatmul.f32.gmra.mxu0 %v124
    %v307 = vpop.f32.mrf.mxu0
    %v308 = vadd.f32 %v219, %v307
    %309 = vmatmul.f32.gmra.mxu0 %v125
    %v310 = vpop.f32.mrf.mxu0
    %v311 = vadd.f32 %v222, %v310
    %312 = vmatmul.f32.gmra.mxu0 %v126
    %v313 = vpop.f32.mrf.mxu0
    %v314 = vadd.f32 %v225, %v313
    %315 = vmatmul.f32.gmra.mxu0 %v127
    %v316 = vpop.f32.mrf.mxu0
    %v317 = vadd.f32 %v228, %v316
    %318 = vmatmul.f32.gmra.mxu0 %v128
    %v319 = vpop.f32.mrf.mxu0
    %v320 = vadd.f32 %v231, %v319
    %321 = vmatmul.f32.gmra.mxu0 %v129
    %v322 = vpop.f32.mrf.mxu0
    %v323 = vadd.f32 %v234, %v322
    %324 = vmatmul.f32.gmra.mxu0 %v130
    %v325 = vpop.f32.mrf.mxu0
    %v326 = vadd.f32 %v237, %v325
    %327 = vmatmul.f32.gmra.mxu0 %v131
    %v328 = vpop.f32.mrf.mxu0
    %v329 = vadd.f32 %v240, %v328
    %330 = vmatmul.f32.gmra.mxu0 %v132
    %v331 = vpop.f32.mrf.mxu0
    %v332 = vadd.f32 %v243, %v331
    %333 = vmatmul.f32.gmra.mxu0 %v133
    %v334 = vpop.f32.mrf.mxu0
    %v335 = vadd.f32 %v246, %v334
    %336 = vmatmul.f32.gmra.mxu0 %v134
    %v337 = vpop.f32.mrf.mxu0
    %v338 = vadd.f32 %v249, %v337
    %339 = vmatmul.f32.gmra.mxu0 %v135
    %v340 = vpop.f32.mrf.mxu0
    %v341 = vadd.f32 %v252, %v340
    %342 = vmatmul.f32.gmra.mxu0 %v136
    %v343 = vpop.f32.mrf.mxu0
    %v344 = vadd.f32 %v255, %v343
    %345 = vmatmul.f32.gmra.mxu0 %v137
    %v346 = vpop.f32.mrf.mxu0
    %v347 = vadd.f32 %v258, %v346
    %348 = vmatmul.f32.gmra.mxu0 %v138
    %v349 = vpop.f32.mrf.mxu0
    %v350 = vadd.f32 %v261, %v349
    %351 = vmatmul.f32.gmra.mxu0 %v139
    %v352 = vpop.f32.mrf.mxu0
    %v353 = vadd.f32 %v264, %v352
    %354 = vdwg.mxu0
    %s355 = scalar_lea.vmem [#allocation2], 256
    %v356 = vld [vmem:[%s355] sm:$0xff]
    %v357 = vld [vmem:[%s355 + $0x8] sm:$0xff]
    %v358 = vld [vmem:[%s355 + $0x10] sm:$0xff]
    %v359 = vld [vmem:[%s355 + $0x18] sm:$0xff]
    %v360 = vld [vmem:[%s355 + $0x20] sm:$0xff]
    %v361 = vld [vmem:[%s355 + $0x28] sm:$0xff]
    %v362 = vld [vmem:[%s355 + $0x30] sm:$0xff]
    %v363 = vld [vmem:[%s355 + $0x38] sm:$0xff]
    %v364 = vld [vmem:[%s355 + $0x40] sm:$0xff]
    %v365 = vld [vmem:[%s355 + $0x48] sm:$0xff]
    %v366 = vld [vmem:[%s355 + $0x50] sm:$0xff]
    %v367 = vld [vmem:[%s355 + $0x58] sm:$0xff]
    %v368 = vld [vmem:[%s355 + $0x60] sm:$0xff]
    %v369 = vld [vmem:[%s355 + $0x68] sm:$0xff]
    %v370 = vld [vmem:[%s355 + $0x70] sm:$0xff]
    %v371 = vld [vmem:[%s355 + $0x78] sm:$0xff]
    %372 = vmatpush.msra.mxu0 %v371
    %373 = vmatpush.msra.mxu0 %v370
    %374 = vmatpush.msra.mxu0 %v369
    %375 = vmatpush.msra.mxu0 %v368
    %376 = vmatpush.msra.mxu0 %v367
    %377 = vmatpush.msra.mxu0 %v366
    %378 = vmatpush.msra.mxu0 %v365
    %379 = vmatpush.msra.mxu0 %v364
    %380 = vmatpush.msra.mxu0 %v363
    %381 = vmatpush.msra.mxu0 %v362
    %382 = vmatpush.msra.mxu0 %v361
    %383 = vmatpush.msra.mxu0 %v360
    %384 = vmatpush.msra.mxu0 %v359
    %385 = vmatpush.msra.mxu0 %v358
    %386 = vmatpush.msra.mxu0 %v357
    %387 = vmatpush.msra.mxu0 %v356
    %388 = vmatmul.f32.gmra.mxu0 %v118
    %v389 = vpop.f32.mrf.mxu0
    %v390 = vadd.f32 0.0, %v389
    %391 = vmatmul.f32.gmra.mxu0 %v119
    %v392 = vpop.f32.mrf.mxu0
    %v393 = vadd.f32 0.0, %v392
    %394 = vmatmul.f32.gmra.mxu0 %v120
    %v395 = vpop.f32.mrf.mxu0
    %v396 = vadd.f32 0.0, %v395
    %397 = vmatmul.f32.gmra.mxu0 %v121
    %v398 = vpop.f32.mrf.mxu0
    %v399 = vadd.f32 0.0, %v398
    %400 = vmatmul.f32.gmra.mxu0 %v122
    %v401 = vpop.f32.mrf.mxu0
    %v402 = vadd.f32 0.0, %v401
    %403 = vmatmul.f32.gmra.mxu0 %v123
    %v404 = vpop.f32.mrf.mxu0
    %v405 = vadd.f32 0.0, %v404
    %406 = vmatmul.f32.gmra.mxu0 %v124
    %v407 = vpop.f32.mrf.mxu0
    %v408 = vadd.f32 0.0, %v407
    %409 = vmatmul.f32.gmra.mxu0 %v125
    %v410 = vpop.f32.mrf.mxu0
    %v411 = vadd.f32 0.0, %v410
    %412 = vmatmul.f32.gmra.mxu0 %v126
    %v413 = vpop.f32.mrf.mxu0
    %v414 = vadd.f32 0.0, %v413
    %415 = vmatmul.f32.gmra.mxu0 %v127
    %v416 = vpop.f32.mrf.mxu0
    %v417 = vadd.f32 0.0, %v416
    %418 = vmatmul.f32.gmra.mxu0 %v128
    %v419 = vpop.f32.mrf.mxu0
    %v420 = vadd.f32 0.0, %v419
    %421 = vmatmul.f32.gmra.mxu0 %v129
    %v422 = vpop.f32.mrf.mxu0
    %v423 = vadd.f32 0.0, %v422
    %424 = vmatmul.f32.gmra.mxu0 %v130
    %v425 = vpop.f32.mrf.mxu0
    %v426 = vadd.f32 0.0, %v425
    %427 = vmatmul.f32.gmra.mxu0 %v131
    %v428 = vpop.f32.mrf.mxu0
    %v429 = vadd.f32 0.0, %v428
    %430 = vmatmul.f32.gmra.mxu0 %v132
    %v431 = vpop.f32.mrf.mxu0
    %v432 = vadd.f32 0.0, %v431
    %433 = vmatmul.f32.gmra.mxu0 %v133
    %v434 = vpop.f32.mrf.mxu0
    %v435 = vadd.f32 0.0, %v434
    %436 = vmatmul.f32.gmra.mxu0 %v134
    %v437 = vpop.f32.mrf.mxu0
    %v438 = vadd.f32 0.0, %v437
    %439 = vmatmul.f32.gmra.mxu0 %v135
    %v440 = vpop.f32.mrf.mxu0
    %v441 = vadd.f32 0.0, %v440
    %442 = vmatmul.f32.gmra.mxu0 %v136
    %v443 = vpop.f32.mrf.mxu0
    %v444 = vadd.f32 0.0, %v443
    %445 = vmatmul.f32.gmra.mxu0 %v137
    %v446 = vpop.f32.mrf.mxu0
    %v447 = vadd.f32 0.0, %v446
    %448 = vmatmul.f32.gmra.mxu0 %v138
    %v449 = vpop.f32.mrf.mxu0
    %v450 = vadd.f32 0.0, %v449
    %451 = vmatmul.f32.gmra.mxu0 %v139
    %v452 = vpop.f32.mrf.mxu0
    %v453 = vadd.f32 0.0, %v452
    %454 = vmatmul.f32.gmra.mxu0 %v140
    %v455 = vpop.f32.mrf.mxu0
    %v456 = vadd.f32 0.0, %v455
    %457 = vmatmul.f32.gmra.mxu0 %v141
    %v458 = vpop.f32.mrf.mxu0
    %v459 = vadd.f32 0.0, %v458
    %460 = vdwg.mxu0
    %v461 = vadd.f32 %v284, %v390
    %v462 = vadd.f32 %v287, %v393
    %v463 = vadd.f32 %v290, %v396
    %v464 = vadd.f32 %v293, %v399
    %v465 = vadd.f32 %v296, %v402
    %v466 = vadd.f32 %v299, %v405
    %v467 = vadd.f32 %v302, %v408
    %v468 = vadd.f32 %v305, %v411
    %v469 = vadd.f32 %v308, %v414
    %v470 = vadd.f32 %v311, %v417
    %v471 = vadd.f32 %v314, %v420
    %v472 = vadd.f32 %v317, %v423
    %v473 = vadd.f32 %v320, %v426
    %v474 = vadd.f32 %v323, %v429
    %v475 = vadd.f32 %v326, %v432
    %v476 = vadd.f32 %v329, %v435
    %v477 = vadd.f32 %v332, %v438
    %v478 = vadd.f32 %v335, %v441
    %v479 = vadd.f32 %v338, %v444
    %v480 = vadd.f32 %v341, %v447
    %v481 = vadd.f32 %v344, %v450
    %v482 = vadd.f32 %v347, %v453
    %v483 = vadd.f32 %v350, %v456
    %v484 = vadd.f32 %v353, %v459
    %s485 = scalar_lea.vmem [#allocation2], 384
    %v486 = vld [vmem:[%s485] sm:$0xff]
    %v487 = vld [vmem:[%s485 + $0x8] sm:$0xff]
    %v488 = vld [vmem:[%s485 + $0x10] sm:$0xff]
    %v489 = vld [vmem:[%s485 + $0x18] sm:$0xff]
    %v490 = vld [vmem:[%s485 + $0x20] sm:$0xff]
    %v491 = vld [vmem:[%s485 + $0x28] sm:$0xff]
    %v492 = vld [vmem:[%s485 + $0x30] sm:$0xff]
    %v493 = vld [vmem:[%s485 + $0x38] sm:$0xff]
    %v494 = vld [vmem:[%s485 + $0x40] sm:$0xff]
    %v495 = vld [vmem:[%s485 + $0x48] sm:$0xff]
    %v496 = vld [vmem:[%s485 + $0x50] sm:$0xff]
    %v497 = vld [vmem:[%s485 + $0x58] sm:$0xff]
    %v498 = vld [vmem:[%s485 + $0x60] sm:$0xff]
    %v499 = vld [vmem:[%s485 + $0x68] sm:$0xff]
    %v500 = vld [vmem:[%s485 + $0x70] sm:$0xff]
    %v501 = vld [vmem:[%s485 + $0x78] sm:$0xff]
    %502 = vmatpush.msra.mxu0 %v501
    %503 = vmatpush.msra.mxu0 %v500
    %504 = vmatpush.msra.mxu0 %v499
    %505 = vmatpush.msra.mxu0 %v498
    %506 = vmatpush.msra.mxu0 %v497
    %507 = vmatpush.msra.mxu0 %v496
    %508 = vmatpush.msra.mxu0 %v495
    %509 = vmatpush.msra.mxu0 %v494
    %510 = vmatpush.msra.mxu0 %v493
    %511 = vmatpush.msra.mxu0 %v492
    %512 = vmatpush.msra.mxu0 %v491
    %513 = vmatpush.msra.mxu0 %v490
    %514 = vmatpush.msra.mxu0 %v489
    %515 = vmatpush.msra.mxu0 %v488
    %516 = vmatpush.msra.mxu0 %v487
    %517 = vmatpush.msra.mxu0 %v486
    %518 = vmatmul.f32.gmra.mxu0 %v119
    %v519 = vpop.f32.mrf.mxu0
    %v520 = vadd.f32 0.0, %v519
    %521 = vmatmul.f32.gmra.mxu0 %v120
    %v522 = vpop.f32.mrf.mxu0
    %v523 = vadd.f32 0.0, %v522
    %524 = vmatmul.f32.gmra.mxu0 %v121
    %v525 = vpop.f32.mrf.mxu0
    %v526 = vadd.f32 0.0, %v525
    %527 = vmatmul.f32.gmra.mxu0 %v122
    %v528 = vpop.f32.mrf.mxu0
    %v529 = vadd.f32 0.0, %v528
    %530 = vmatmul.f32.gmra.mxu0 %v123
    %v531 = vpop.f32.mrf.mxu0
    %v532 = vadd.f32 0.0, %v531
    %533 = vmatmul.f32.gmra.mxu0 %v124
    %v534 = vpop.f32.mrf.mxu0
    %v535 = vadd.f32 0.0, %v534
    %536 = vmatmul.f32.gmra.mxu0 %v125
    %v537 = vpop.f32.mrf.mxu0
    %v538 = vadd.f32 0.0, %v537
    %539 = vmatmul.f32.gmra.mxu0 %v126
    %v540 = vpop.f32.mrf.mxu0
    %v541 = vadd.f32 0.0, %v540
    %542 = vmatmul.f32.gmra.mxu0 %v127
    %v543 = vpop.f32.mrf.mxu0
    %v544 = vadd.f32 0.0, %v543
    %545 = vmatmul.f32.gmra.mxu0 %v128
    %v546 = vpop.f32.mrf.mxu0
    %v547 = vadd.f32 0.0, %v546
    %548 = vmatmul.f32.gmra.mxu0 %v129
    %v549 = vpop.f32.mrf.mxu0
    %v550 = vadd.f32 0.0, %v549
    %551 = vmatmul.f32.gmra.mxu0 %v130
    %v552 = vpop.f32.mrf.mxu0
    %v553 = vadd.f32 0.0, %v552
    %554 = vmatmul.f32.gmra.mxu0 %v131
    %v555 = vpop.f32.mrf.mxu0
    %v556 = vadd.f32 0.0, %v555
    %557 = vmatmul.f32.gmra.mxu0 %v132
    %v558 = vpop.f32.mrf.mxu0
    %v559 = vadd.f32 0.0, %v558
    %560 = vmatmul.f32.gmra.mxu0 %v133
    %v561 = vpop.f32.mrf.mxu0
    %v562 = vadd.f32 0.0, %v561
    %563 = vmatmul.f32.gmra.mxu0 %v134
    %v564 = vpop.f32.mrf.mxu0
    %v565 = vadd.f32 0.0, %v564
    %566 = vmatmul.f32.gmra.mxu0 %v135
    %v567 = vpop.f32.mrf.mxu0
    %v568 = vadd.f32 0.0, %v567
    %569 = vmatmul.f32.gmra.mxu0 %v136
    %v570 = vpop.f32.mrf.mxu0
    %v571 = vadd.f32 0.0, %v570
    %572 = vmatmul.f32.gmra.mxu0 %v137
    %v573 = vpop.f32.mrf.mxu0
    %v574 = vadd.f32 0.0, %v573
    %575 = vmatmul.f32.gmra.mxu0 %v138
    %v576 = vpop.f32.mrf.mxu0
    %v577 = vadd.f32 0.0, %v576
    %578 = vmatmul.f32.gmra.mxu0 %v139
    %v579 = vpop.f32.mrf.mxu0
    %v580 = vadd.f32 0.0, %v579
    %581 = vmatmul.f32.gmra.mxu0 %v140
    %v582 = vpop.f32.mrf.mxu0
    %v583 = vadd.f32 0.0, %v582
    %584 = vmatmul.f32.gmra.mxu0 %v141
    %v585 = vpop.f32.mrf.mxu0
    %v586 = vadd.f32 0.0, %v585
    %587 = vmatmul.f32.gmra.mxu0 %v142
    %v588 = vpop.f32.mrf.mxu0
    %v589 = vadd.f32 0.0, %v588
    %590 = vdwg.mxu0
    %v591 = vadd.f32 %v461, %v520
    %v592 = vadd.f32 %v462, %v523
    %v593 = vadd.f32 %v463, %v526
    %v594 = vadd.f32 %v464, %v529
    %v595 = vadd.f32 %v465, %v532
    %v596 = vadd.f32 %v466, %v535
    %v597 = vadd.f32 %v467, %v538
    %v598 = vadd.f32 %v468, %v541
    %v599 = vadd.f32 %v469, %v544
    %v600 = vadd.f32 %v470, %v547
    %v601 = vadd.f32 %v471, %v550
    %v602 = vadd.f32 %v472, %v553
    %v603 = vadd.f32 %v473, %v556
    %v604 = vadd.f32 %v474, %v559
    %v605 = vadd.f32 %v475, %v562
    %v606 = vadd.f32 %v476, %v565
    %v607 = vadd.f32 %v477, %v568
    %v608 = vadd.f32 %v478, %v571
    %v609 = vadd.f32 %v479, %v574
    %v610 = vadd.f32 %v480, %v577
    %v611 = vadd.f32 %v481, %v580
    %v612 = vadd.f32 %v482, %v583
    %v613 = vadd.f32 %v483, %v586
    %v614 = vadd.f32 %v484, %v589
    %s615 = scalar_lea.vmem [#allocation2], 512
    %v616 = vld [vmem:[%s615] sm:$0xff]
    %v617 = vld [vmem:[%s615 + $0x8] sm:$0xff]
    %v618 = vld [vmem:[%s615 + $0x10] sm:$0xff]
    %v619 = vld [vmem:[%s615 + $0x18] sm:$0xff]
    %v620 = vld [vmem:[%s615 + $0x20] sm:$0xff]
    %v621 = vld [vmem:[%s615 + $0x28] sm:$0xff]
    %v622 = vld [vmem:[%s615 + $0x30] sm:$0xff]
    %v623 = vld [vmem:[%s615 + $0x38] sm:$0xff]
    %v624 = vld [vmem:[%s615 + $0x40] sm:$0xff]
    %v625 = vld [vmem:[%s615 + $0x48] sm:$0xff]
    %v626 = vld [vmem:[%s615 + $0x50] sm:$0xff]
    %v627 = vld [vmem:[%s615 + $0x58] sm:$0xff]
    %v628 = vld [vmem:[%s615 + $0x60] sm:$0xff]
    %v629 = vld [vmem:[%s615 + $0x68] sm:$0xff]
    %v630 = vld [vmem:[%s615 + $0x70] sm:$0xff]
    %v631 = vld [vmem:[%s615 + $0x78] sm:$0xff]
    %632 = vmatpush.msra.mxu0 %v631
    %633 = vmatpush.msra.mxu0 %v630
    %634 = vmatpush.msra.mxu0 %v629
    %635 = vmatpush.msra.mxu0 %v628
    %636 = vmatpush.msra.mxu0 %v627
    %637 = vmatpush.msra.mxu0 %v626
    %638 = vmatpush.msra.mxu0 %v625
    %639 = vmatpush.msra.mxu0 %v624
    %640 = vmatpush.msra.mxu0 %v623
    %641 = vmatpush.msra.mxu0 %v622
    %642 = vmatpush.msra.mxu0 %v621
    %643 = vmatpush.msra.mxu0 %v620
    %644 = vmatpush.msra.mxu0 %v619
    %645 = vmatpush.msra.mxu0 %v618
    %646 = vmatpush.msra.mxu0 %v617
    %647 = vmatpush.msra.mxu0 %v616
    %648 = vmatmul.f32.gmra.mxu0 %v120
    %v649 = vpop.f32.mrf.mxu0
    %v650 = vadd.f32 0.0, %v649
    %651 = vmatmul.f32.gmra.mxu0 %v121
    %v652 = vpop.f32.mrf.mxu0
    %v653 = vadd.f32 0.0, %v652
    %654 = vmatmul.f32.gmra.mxu0 %v122
    %v655 = vpop.f32.mrf.mxu0
    %v656 = vadd.f32 0.0, %v655
    %657 = vmatmul.f32.gmra.mxu0 %v123
    %v658 = vpop.f32.mrf.mxu0
    %v659 = vadd.f32 0.0, %v658
    %660 = vmatmul.f32.gmra.mxu0 %v124
    %v661 = vpop.f32.mrf.mxu0
    %v662 = vadd.f32 0.0, %v661
    %663 = vmatmul.f32.gmra.mxu0 %v125
    %v664 = vpop.f32.mrf.mxu0
    %v665 = vadd.f32 0.0, %v664
    %666 = vmatmul.f32.gmra.mxu0 %v126
    %v667 = vpop.f32.mrf.mxu0
    %v668 = vadd.f32 0.0, %v667
    %669 = vmatmul.f32.gmra.mxu0 %v127
    %v670 = vpop.f32.mrf.mxu0
    %v671 = vadd.f32 0.0, %v670
    %672 = vmatmul.f32.gmra.mxu0 %v128
    %v673 = vpop.f32.mrf.mxu0
    %v674 = vadd.f32 0.0, %v673
    %675 = vmatmul.f32.gmra.mxu0 %v129
    %v676 = vpop.f32.mrf.mxu0
    %v677 = vadd.f32 0.0, %v676
    %678 = vmatmul.f32.gmra.mxu0 %v130
    %v679 = vpop.f32.mrf.mxu0
    %v680 = vadd.f32 0.0, %v679
    %681 = vmatmul.f32.gmra.mxu0 %v131
    %v682 = vpop.f32.mrf.mxu0
    %v683 = vadd.f32 0.0, %v682
    %684 = vmatmul.f32.gmra.mxu0 %v132
    %v685 = vpop.f32.mrf.mxu0
    %v686 = vadd.f32 0.0, %v685
    %687 = vmatmul.f32.gmra.mxu0 %v133
    %v688 = vpop.f32.mrf.mxu0
    %v689 = vadd.f32 0.0, %v688
    %690 = vmatmul.f32.gmra.mxu0 %v134
    %v691 = vpop.f32.mrf.mxu0
    %v692 = vadd.f32 0.0, %v691
    %693 = vmatmul.f32.gmra.mxu0 %v135
    %v694 = vpop.f32.mrf.mxu0
    %v695 = vadd.f32 0.0, %v694
    %696 = vmatmul.f32.gmra.mxu0 %v136
    %v697 = vpop.f32.mrf.mxu0
    %v698 = vadd.f32 0.0, %v697
    %699 = vmatmul.f32.gmra.mxu0 %v137
    %v700 = vpop.f32.mrf.mxu0
    %v701 = vadd.f32 0.0, %v700
    %702 = vmatmul.f32.gmra.mxu0 %v138
    %v703 = vpop.f32.mrf.mxu0
    %v704 = vadd.f32 0.0, %v703
    %705 = vmatmul.f32.gmra.mxu0 %v139
    %v706 = vpop.f32.mrf.mxu0
    %v707 = vadd.f32 0.0, %v706
    %708 = vmatmul.f32.gmra.mxu0 %v140
    %v709 = vpop.f32.mrf.mxu0
    %v710 = vadd.f32 0.0, %v709
    %711 = vmatmul.f32.gmra.mxu0 %v141
    %v712 = vpop.f32.mrf.mxu0
    %v713 = vadd.f32 0.0, %v712
    %714 = vmatmul.f32.gmra.mxu0 %v142
    %v715 = vpop.f32.mrf.mxu0
    %v716 = vadd.f32 0.0, %v715
    %717 = vmatmul.f32.gmra.mxu0 %v143
    %v718 = vpop.f32.mrf.mxu0
    %v719 = vadd.f32 0.0, %v718
    %720 = vdwg.mxu0
    %v721 = vadd.f32 %v591, %v650
    %v722 = vadd.f32 %v592, %v653
    %v723 = vadd.f32 %v593, %v656
    %v724 = vadd.f32 %v594, %v659
    %v725 = vadd.f32 %v595, %v662
    %v726 = vadd.f32 %v596, %v665
    %v727 = vadd.f32 %v597, %v668
    %v728 = vadd.f32 %v598, %v671
    %v729 = vadd.f32 %v599, %v674
    %v730 = vadd.f32 %v600, %v677
    %v731 = vadd.f32 %v601, %v680
    %v732 = vadd.f32 %v602, %v683
    %v733 = vadd.f32 %v603, %v686
    %v734 = vadd.f32 %v604, %v689
    %v735 = vadd.f32 %v605, %v692
    %v736 = vadd.f32 %v606, %v695
    %v737 = vadd.f32 %v607, %v698
    %v738 = vadd.f32 %v608, %v701
    %v739 = vadd.f32 %v609, %v704
    %v740 = vadd.f32 %v610, %v707
    %v741 = vadd.f32 %v611, %v710
    %v742 = vadd.f32 %v612, %v713
    %v743 = vadd.f32 %v613, %v716
    %v744 = vadd.f32 %v614, %v719
    %v745 = vld [vmem:[#allocation4] sm:$0xff]
    %v746 = vld [vmem:[#allocation4 + $0x8] sm:$0xff]
    %v747 = vld [vmem:[#allocation4 + $0x10] sm:$0xff]
    %v748 = vld [vmem:[#allocation4 + $0x18] sm:$0xff]
    %v749 = vld [vmem:[#allocation4 + $0x20] sm:$0xff]
    %v750 = vld [vmem:[#allocation4 + $0x28] sm:$0xff]
    %v751 = vld [vmem:[#allocation4 + $0x30] sm:$0xff]
    %v752 = vld [vmem:[#allocation4 + $0x38] sm:$0xff]
    %v753 = vld [vmem:[#allocation4 + $0x40] sm:$0xff]
    %v754 = vld [vmem:[#allocation4 + $0x48] sm:$0xff]
    %v755 = vld [vmem:[#allocation4 + $0x50] sm:$0xff]
    %v756 = vld [vmem:[#allocation4 + $0x58] sm:$0xff]
    %v757 = vld [vmem:[#allocation4 + $0x60] sm:$0xff]
    %v758 = vld [vmem:[#allocation4 + $0x68] sm:$0xff]
    %v759 = vld [vmem:[#allocation4 + $0x70] sm:$0xff]
    %v760 = vld [vmem:[#allocation4 + $0x78] sm:$0xff]
    %s761 = scalar_lea.vmem [#allocation4], 128
    %v762 = vld [vmem:[%s761] sm:$0xff]
    %v763 = vld [vmem:[%s761 + $0x8] sm:$0xff]
    %v764 = vld [vmem:[%s761 + $0x10] sm:$0xff]
    %v765 = vld [vmem:[%s761 + $0x18] sm:$0xff]
    %v766 = vld [vmem:[%s761 + $0x20] sm:$0xff]
    %v767 = vld [vmem:[%s761 + $0x28] sm:$0xff]
    %v768 = vld [vmem:[%s761 + $0x30] sm:$0xff]
    %v769 = vld [vmem:[%s761 + $0x38] sm:$0xff]
    %v770 = vld [vmem:[%s761 + $0x40] sm:$0xff]
    %v771 = vld [vmem:[%s761 + $0x48] sm:$0xff]
    %v772 = vld [vmem:[%s761 + $0x50] sm:$0xff]
    %v773 = vld [vmem:[%s761 + $0x58] sm:$0xff]
    %v774 = vld [vmem:[%s761 + $0x60] sm:$0xff]
    %v775 = vld [vmem:[%s761 + $0x68] sm:$0xff]
    %v776 = vld [vmem:[%s761 + $0x70] sm:$0xff]
    %v777 = vld [vmem:[%s761 + $0x78] sm:$0xff]
    %778 = vmatpush.msra.mxu0 %v777
    %779 = vmatpush.msra.mxu0 %v776
    %780 = vmatpush.msra.mxu0 %v775
    %781 = vmatpush.msra.mxu0 %v774
    %782 = vmatpush.msra.mxu0 %v773
    %783 = vmatpush.msra.mxu0 %v772
    %784 = vmatpush.msra.mxu0 %v771
    %785 = vmatpush.msra.mxu0 %v770
    %786 = vmatpush.msra.mxu0 %v769
    %787 = vmatpush.msra.mxu0 %v768
    %788 = vmatpush.msra.mxu0 %v767
    %789 = vmatpush.msra.mxu0 %v766
    %790 = vmatpush.msra.mxu0 %v765
    %791 = vmatpush.msra.mxu0 %v764
    %792 = vmatpush.msra.mxu0 %v763
    %793 = vmatpush.msra.mxu0 %v762
    %794 = vmatmul.f32.gmra.mxu0 %v117
    %v795 = vpop.f32.mrf.mxu0
    %v796 = vadd.f32 0.0, %v795
    %797 = vmatmul.f32.gmra.mxu0 %v118
    %v798 = vpop.f32.mrf.mxu0
    %v799 = vadd.f32 0.0, %v798
    %800 = vmatmul.f32.gmra.mxu0 %v119
    %v801 = vpop.f32.mrf.mxu0
    %v802 = vadd.f32 0.0, %v801
    %803 = vmatmul.f32.gmra.mxu0 %v120
    %v804 = vpop.f32.mrf.mxu0
    %v805 = vadd.f32 0.0, %v804
    %806 = vmatmul.f32.gmra.mxu0 %v121
    %v807 = vpop.f32.mrf.mxu0
    %v808 = vadd.f32 0.0, %v807
    %809 = vmatmul.f32.gmra.mxu0 %v122
    %v810 = vpop.f32.mrf.mxu0
    %v811 = vadd.f32 0.0, %v810
    %812 = vmatmul.f32.gmra.mxu0 %v123
    %v813 = vpop.f32.mrf.mxu0
    %v814 = vadd.f32 0.0, %v813
    %815 = vmatmul.f32.gmra.mxu0 %v124
    %v816 = vpop.f32.mrf.mxu0
    %v817 = vadd.f32 0.0, %v816
    %818 = vmatmul.f32.gmra.mxu0 %v125
    %v819 = vpop.f32.mrf.mxu0
    %v820 = vadd.f32 0.0, %v819
    %821 = vmatmul.f32.gmra.mxu0 %v126
    %v822 = vpop.f32.mrf.mxu0
    %v823 = vadd.f32 0.0, %v822
    %824 = vmatmul.f32.gmra.mxu0 %v127
    %v825 = vpop.f32.mrf.mxu0
    %v826 = vadd.f32 0.0, %v825
    %827 = vmatmul.f32.gmra.mxu0 %v128
    %v828 = vpop.f32.mrf.mxu0
    %v829 = vadd.f32 0.0, %v828
    %830 = vmatmul.f32.gmra.mxu0 %v129
    %v831 = vpop.f32.mrf.mxu0
    %v832 = vadd.f32 0.0, %v831
    %833 = vmatmul.f32.gmra.mxu0 %v130
    %v834 = vpop.f32.mrf.mxu0
    %v835 = vadd.f32 0.0, %v834
    %836 = vmatmul.f32.gmra.mxu0 %v131
    %v837 = vpop.f32.mrf.mxu0
    %v838 = vadd.f32 0.0, %v837
    %839 = vmatmul.f32.gmra.mxu0 %v132
    %v840 = vpop.f32.mrf.mxu0
    %v841 = vadd.f32 0.0, %v840
    %842 = vmatmul.f32.gmra.mxu0 %v133
    %v843 = vpop.f32.mrf.mxu0
    %v844 = vadd.f32 0.0, %v843
    %845 = vmatmul.f32.gmra.mxu0 %v134
    %v846 = vpop.f32.mrf.mxu0
    %v847 = vadd.f32 0.0, %v846
    %848 = vmatmul.f32.gmra.mxu0 %v135
    %v849 = vpop.f32.mrf.mxu0
    %v850 = vadd.f32 0.0, %v849
    %851 = vmatmul.f32.gmra.mxu0 %v136
    %v852 = vpop.f32.mrf.mxu0
    %v853 = vadd.f32 0.0, %v852
    %854 = vmatmul.f32.gmra.mxu0 %v137
    %v855 = vpop.f32.mrf.mxu0
    %v856 = vadd.f32 0.0, %v855
    %857 = vmatmul.f32.gmra.mxu0 %v138
    %v858 = vpop.f32.mrf.mxu0
    %v859 = vadd.f32 0.0, %v858
    %860 = vmatmul.f32.gmra.mxu0 %v139
    %v861 = vpop.f32.mrf.mxu0
    %v862 = vadd.f32 0.0, %v861
    %863 = vmatmul.f32.gmra.mxu0 %v140
    %v864 = vpop.f32.mrf.mxu0
    %v865 = vadd.f32 0.0, %v864
    %866 = vdwg.mxu0
    %867 = vmatpush.msra.mxu0 %v760
    %868 = vmatpush.msra.mxu0 %v759
    %869 = vmatpush.msra.mxu0 %v758
    %870 = vmatpush.msra.mxu0 %v757
    %871 = vmatpush.msra.mxu0 %v756
    %872 = vmatpush.msra.mxu0 %v755
    %873 = vmatpush.msra.mxu0 %v754
    %874 = vmatpush.msra.mxu0 %v753
    %875 = vmatpush.msra.mxu0 %v752
    %876 = vmatpush.msra.mxu0 %v751
    %877 = vmatpush.msra.mxu0 %v750
    %878 = vmatpush.msra.mxu0 %v749
    %879 = vmatpush.msra.mxu0 %v748
    %880 = vmatpush.msra.mxu0 %v747
    %881 = vmatpush.msra.mxu0 %v746
    %882 = vmatpush.msra.mxu0 %v745
    %883 = vmatmul.f32.gmra.mxu0 %v116
    %v884 = vpop.f32.mrf.mxu0
    %v885 = vadd.f32 %v796, %v884
    %886 = vmatmul.f32.gmra.mxu0 %v117
    %v887 = vpop.f32.mrf.mxu0
    %v888 = vadd.f32 %v799, %v887
    %889 = vmatmul.f32.gmra.mxu0 %v118
    %v890 = vpop.f32.mrf.mxu0
    %v891 = vadd.f32 %v802, %v890
    %892 = vmatmul.f32.gmra.mxu0 %v119
    %v893 = vpop.f32.mrf.mxu0
    %v894 = vadd.f32 %v805, %v893
    %895 = vmatmul.f32.gmra.mxu0 %v120
    %v896 = vpop.f32.mrf.mxu0
    %v897 = vadd.f32 %v808, %v896
    %898 = vmatmul.f32.gmra.mxu0 %v121
    %v899 = vpop.f32.mrf.mxu0
    %v900 = vadd.f32 %v811, %v899
    %901 = vmatmul.f32.gmra.mxu0 %v122
    %v902 = vpop.f32.mrf.mxu0
    %v903 = vadd.f32 %v814, %v902
    %904 = vmatmul.f32.gmra.mxu0 %v123
    %v905 = vpop.f32.mrf.mxu0
    %v906 = vadd.f32 %v817, %v905
    %907 = vmatmul.f32.gmra.mxu0 %v124
    %v908 = vpop.f32.mrf.mxu0
    %v909 = vadd.f32 %v820, %v908
    %910 = vmatmul.f32.gmra.mxu0 %v125
    %v911 = vpop.f32.mrf.mxu0
    %v912 = vadd.f32 %v823, %v911
    %913 = vmatmul.f32.gmra.mxu0 %v126
    %v914 = vpop.f32.mrf.mxu0
    %v915 = vadd.f32 %v826, %v914
    %916 = vmatmul.f32.gmra.mxu0 %v127
    %v917 = vpop.f32.mrf.mxu0
    %v918 = vadd.f32 %v829, %v917
    %919 = vmatmul.f32.gmra.mxu0 %v128
    %v920 = vpop.f32.mrf.mxu0
    %v921 = vadd.f32 %v832, %v920
    %922 = vmatmul.f32.gmra.mxu0 %v129
    %v923 = vpop.f32.mrf.mxu0
    %v924 = vadd.f32 %v835, %v923
    %925 = vmatmul.f32.gmra.mxu0 %v130
    %v926 = vpop.f32.mrf.mxu0
    %v927 = vadd.f32 %v838, %v926
    %928 = vmatmul.f32.gmra.mxu0 %v131
    %v929 = vpop.f32.mrf.mxu0
    %v930 = vadd.f32 %v841, %v929
    %931 = vmatmul.f32.gmra.mxu0 %v132
    %v932 = vpop.f32.mrf.mxu0
    %v933 = vadd.f32 %v844, %v932
    %934 = vmatmul.f32.gmra.mxu0 %v133
    %v935 = vpop.f32.mrf.mxu0
    %v936 = vadd.f32 %v847, %v935
    %937 = vmatmul.f32.gmra.mxu0 %v134
    %v938 = vpop.f32.mrf.mxu0
    %v939 = vadd.f32 %v850, %v938
    %940 = vmatmul.f32.gmra.mxu0 %v135
    %v941 = vpop.f32.mrf.mxu0
    %v942 = vadd.f32 %v853, %v941
    %943 = vmatmul.f32.gmra.mxu0 %v136
    %v944 = vpop.f32.mrf.mxu0
    %v945 = vadd.f32 %v856, %v944
    %946 = vmatmul.f32.gmra.mxu0 %v137
    %v947 = vpop.f32.mrf.mxu0
    %v948 = vadd.f32 %v859, %v947
    %949 = vmatmul.f32.gmra.mxu0 %v138
    %v950 = vpop.f32.mrf.mxu0
    %v951 = vadd.f32 %v862, %v950
    %952 = vmatmul.f32.gmra.mxu0 %v139
    %v953 = vpop.f32.mrf.mxu0
    %v954 = vadd.f32 %v865, %v953
    %955 = vdwg.mxu0
    %s956 = scalar_lea.vmem [#allocation4], 256
    %v957 = vld [vmem:[%s956] sm:$0xff]
    %v958 = vld [vmem:[%s956 + $0x8] sm:$0xff]
    %v959 = vld [vmem:[%s956 + $0x10] sm:$0xff]
    %v960 = vld [vmem:[%s956 + $0x18] sm:$0xff]
    %v961 = vld [vmem:[%s956 + $0x20] sm:$0xff]
    %v962 = vld [vmem:[%s956 + $0x28] sm:$0xff]
    %v963 = vld [vmem:[%s956 + $0x30] sm:$0xff]
    %v964 = vld [vmem:[%s956 + $0x38] sm:$0xff]
    %v965 = vld [vmem:[%s956 + $0x40] sm:$0xff]
    %v966 = vld [vmem:[%s956 + $0x48] sm:$0xff]
    %v967 = vld [vmem:[%s956 + $0x50] sm:$0xff]
    %v968 = vld [vmem:[%s956 + $0x58] sm:$0xff]
    %v969 = vld [vmem:[%s956 + $0x60] sm:$0xff]
    %v970 = vld [vmem:[%s956 + $0x68] sm:$0xff]
    %v971 = vld [vmem:[%s956 + $0x70] sm:$0xff]
    %v972 = vld [vmem:[%s956 + $0x78] sm:$0xff]
    %973 = vmatpush.msra.mxu0 %v972
    %974 = vmatpush.msra.mxu0 %v971
    %975 = vmatpush.msra.mxu0 %v970
    %976 = vmatpush.msra.mxu0 %v969
    %977 = vmatpush.msra.mxu0 %v968
    %978 = vmatpush.msra.mxu0 %v967
    %979 = vmatpush.msra.mxu0 %v966
    %980 = vmatpush.msra.mxu0 %v965
    %981 = vmatpush.msra.mxu0 %v964
    %982 = vmatpush.msra.mxu0 %v963
    %983 = vmatpush.msra.mxu0 %v962
    %984 = vmatpush.msra.mxu0 %v961
    %985 = vmatpush.msra.mxu0 %v960
    %986 = vmatpush.msra.mxu0 %v959
    %987 = vmatpush.msra.mxu0 %v958
    %988 = vmatpush.msra.mxu0 %v957
    %989 = vmatmul.f32.gmra.mxu0 %v118
    %v990 = vpop.f32.mrf.mxu0
    %v991 = vadd.f32 0.0, %v990
    %992 = vmatmul.f32.gmra.mxu0 %v119
    %v993 = vpop.f32.mrf.mxu0
    %v994 = vadd.f32 0.0, %v993
    %995 = vmatmul.f32.gmra.mxu0 %v120
    %v996 = vpop.f32.mrf.mxu0
    %v997 = vadd.f32 0.0, %v996
    %998 = vmatmul.f32.gmra.mxu0 %v121
    %v999 = vpop.f32.mrf.mxu0
    %v1000 = vadd.f32 0.0, %v999
    %1001 = vmatmul.f32.gmra.mxu0 %v122
    %v1002 = vpop.f32.mrf.mxu0
    %v1003 = vadd.f32 0.0, %v1002
    %1004 = vmatmul.f32.gmra.mxu0 %v123
    %v1005 = vpop.f32.mrf.mxu0
    %v1006 = vadd.f32 0.0, %v1005
    %1007 = vmatmul.f32.gmra.mxu0 %v124
    %v1008 = vpop.f32.mrf.mxu0
    %v1009 = vadd.f32 0.0, %v1008
    %1010 = vmatmul.f32.gmra.mxu0 %v125
    %v1011 = vpop.f32.mrf.mxu0
    %v1012 = vadd.f32 0.0, %v1011
    %1013 = vmatmul.f32.gmra.mxu0 %v126
    %v1014 = vpop.f32.mrf.mxu0
    %v1015 = vadd.f32 0.0, %v1014
    %1016 = vmatmul.f32.gmra.mxu0 %v127
    %v1017 = vpop.f32.mrf.mxu0
    %v1018 = vadd.f32 0.0, %v1017
    %1019 = vmatmul.f32.gmra.mxu0 %v128
    %v1020 = vpop.f32.mrf.mxu0
    %v1021 = vadd.f32 0.0, %v1020
    %1022 = vmatmul.f32.gmra.mxu0 %v129
    %v1023 = vpop.f32.mrf.mxu0
    %v1024 = vadd.f32 0.0, %v1023
    %1025 = vmatmul.f32.gmra.mxu0 %v130
    %v1026 = vpop.f32.mrf.mxu0
    %v1027 = vadd.f32 0.0, %v1026
    %1028 = vmatmul.f32.gmra.mxu0 %v131
    %v1029 = vpop.f32.mrf.mxu0
    %v1030 = vadd.f32 0.0, %v1029
    %1031 = vmatmul.f32.gmra.mxu0 %v132
    %v1032 = vpop.f32.mrf.mxu0
    %v1033 = vadd.f32 0.0, %v1032
    %1034 = vmatmul.f32.gmra.mxu0 %v133
    %v1035 = vpop.f32.mrf.mxu0
    %v1036 = vadd.f32 0.0, %v1035
    %1037 = vmatmul.f32.gmra.mxu0 %v134
    %v1038 = vpop.f32.mrf.mxu0
    %v1039 = vadd.f32 0.0, %v1038
    %1040 = vmatmul.f32.gmra.mxu0 %v135
    %v1041 = vpop.f32.mrf.mxu0
    %v1042 = vadd.f32 0.0, %v1041
    %1043 = vmatmul.f32.gmra.mxu0 %v136
    %v1044 = vpop.f32.mrf.mxu0
    %v1045 = vadd.f32 0.0, %v1044
    %1046 = vmatmul.f32.gmra.mxu0 %v137
    %v1047 = vpop.f32.mrf.mxu0
    %v1048 = vadd.f32 0.0, %v1047
    %1049 = vmatmul.f32.gmra.mxu0 %v138
    %v1050 = vpop.f32.mrf.mxu0
    %v1051 = vadd.f32 0.0, %v1050
    %1052 = vmatmul.f32.gmra.mxu0 %v139
    %v1053 = vpop.f32.mrf.mxu0
    %v1054 = vadd.f32 0.0, %v1053
    %1055 = vmatmul.f32.gmra.mxu0 %v140
    %v1056 = vpop.f32.mrf.mxu0
    %v1057 = vadd.f32 0.0, %v1056
    %1058 = vmatmul.f32.gmra.mxu0 %v141
    %v1059 = vpop.f32.mrf.mxu0
    %v1060 = vadd.f32 0.0, %v1059
    %1061 = vdwg.mxu0
    %v1062 = vadd.f32 %v885, %v991
    %v1063 = vadd.f32 %v888, %v994
    %v1064 = vadd.f32 %v891, %v997
    %v1065 = vadd.f32 %v894, %v1000
    %v1066 = vadd.f32 %v897, %v1003
    %v1067 = vadd.f32 %v900, %v1006
    %v1068 = vadd.f32 %v903, %v1009
    %v1069 = vadd.f32 %v906, %v1012
    %v1070 = vadd.f32 %v909, %v1015
    %v1071 = vadd.f32 %v912, %v1018
    %v1072 = vadd.f32 %v915, %v1021
    %v1073 = vadd.f32 %v918, %v1024
    %v1074 = vadd.f32 %v921, %v1027
    %v1075 = vadd.f32 %v924, %v1030
    %v1076 = vadd.f32 %v927, %v1033
    %v1077 = vadd.f32 %v930, %v1036
    %v1078 = vadd.f32 %v933, %v1039
    %v1079 = vadd.f32 %v936, %v1042
    %v1080 = vadd.f32 %v939, %v1045
    %v1081 = vadd.f32 %v942, %v1048
    %v1082 = vadd.f32 %v945, %v1051
    %v1083 = vadd.f32 %v948, %v1054
    %v1084 = vadd.f32 %v951, %v1057
    %v1085 = vadd.f32 %v954, %v1060
    %s1086 = scalar_lea.vmem [#allocation4], 384
    %v1087 = vld [vmem:[%s1086] sm:$0xff]
    %v1088 = vld [vmem:[%s1086 + $0x8] sm:$0xff]
    %v1089 = vld [vmem:[%s1086 + $0x10] sm:$0xff]
    %v1090 = vld [vmem:[%s1086 + $0x18] sm:$0xff]
    %v1091 = vld [vmem:[%s1086 + $0x20] sm:$0xff]
    %v1092 = vld [vmem:[%s1086 + $0x28] sm:$0xff]
    %v1093 = vld [vmem:[%s1086 + $0x30] sm:$0xff]
    %v1094 = vld [vmem:[%s1086 + $0x38] sm:$0xff]
    %v1095 = vld [vmem:[%s1086 + $0x40] sm:$0xff]
    %v1096 = vld [vmem:[%s1086 + $0x48] sm:$0xff]
    %v1097 = vld [vmem:[%s1086 + $0x50] sm:$0xff]
    %v1098 = vld [vmem:[%s1086 + $0x58] sm:$0xff]
    %v1099 = vld [vmem:[%s1086 + $0x60] sm:$0xff]
    %v1100 = vld [vmem:[%s1086 + $0x68] sm:$0xff]
    %v1101 = vld [vmem:[%s1086 + $0x70] sm:$0xff]
    %v1102 = vld [vmem:[%s1086 + $0x78] sm:$0xff]
    %1103 = vmatpush.msra.mxu0 %v1102
    %1104 = vmatpush.msra.mxu0 %v1101
    %1105 = vmatpush.msra.mxu0 %v1100
    %1106 = vmatpush.msra.mxu0 %v1099
    %1107 = vmatpush.msra.mxu0 %v1098
    %1108 = vmatpush.msra.mxu0 %v1097
    %1109 = vmatpush.msra.mxu0 %v1096
    %1110 = vmatpush.msra.mxu0 %v1095
    %1111 = vmatpush.msra.mxu0 %v1094
    %1112 = vmatpush.msra.mxu0 %v1093
    %1113 = vmatpush.msra.mxu0 %v1092
    %1114 = vmatpush.msra.mxu0 %v1091
    %1115 = vmatpush.msra.mxu0 %v1090
    %1116 = vmatpush.msra.mxu0 %v1089
    %1117 = vmatpush.msra.mxu0 %v1088
    %1118 = vmatpush.msra.mxu0 %v1087
    %1119 = vmatmul.f32.gmra.mxu0 %v119
    %v1120 = vpop.f32.mrf.mxu0
    %v1121 = vadd.f32 0.0, %v1120
    %1122 = vmatmul.f32.gmra.mxu0 %v120
    %v1123 = vpop.f32.mrf.mxu0
    %v1124 = vadd.f32 0.0, %v1123
    %1125 = vmatmul.f32.gmra.mxu0 %v121
    %v1126 = vpop.f32.mrf.mxu0
    %v1127 = vadd.f32 0.0, %v1126
    %1128 = vmatmul.f32.gmra.mxu0 %v122
    %v1129 = vpop.f32.mrf.mxu0
    %v1130 = vadd.f32 0.0, %v1129
    %1131 = vmatmul.f32.gmra.mxu0 %v123
    %v1132 = vpop.f32.mrf.mxu0
    %v1133 = vadd.f32 0.0, %v1132
    %1134 = vmatmul.f32.gmra.mxu0 %v124
    %v1135 = vpop.f32.mrf.mxu0
    %v1136 = vadd.f32 0.0, %v1135
    %1137 = vmatmul.f32.gmra.mxu0 %v125
    %v1138 = vpop.f32.mrf.mxu0
    %v1139 = vadd.f32 0.0, %v1138
    %1140 = vmatmul.f32.gmra.mxu0 %v126
    %v1141 = vpop.f32.mrf.mxu0
    %v1142 = vadd.f32 0.0, %v1141
    %1143 = vmatmul.f32.gmra.mxu0 %v127
    %v1144 = vpop.f32.mrf.mxu0
    %v1145 = vadd.f32 0.0, %v1144
    %1146 = vmatmul.f32.gmra.mxu0 %v128
    %v1147 = vpop.f32.mrf.mxu0
    %v1148 = vadd.f32 0.0, %v1147
    %1149 = vmatmul.f32.gmra.mxu0 %v129
    %v1150 = vpop.f32.mrf.mxu0
    %v1151 = vadd.f32 0.0, %v1150
    %1152 = vmatmul.f32.gmra.mxu0 %v130
    %v1153 = vpop.f32.mrf.mxu0
    %v1154 = vadd.f32 0.0, %v1153
    %1155 = vmatmul.f32.gmra.mxu0 %v131
    %v1156 = vpop.f32.mrf.mxu0
    %v1157 = vadd.f32 0.0, %v1156
    %1158 = vmatmul.f32.gmra.mxu0 %v132
    %v1159 = vpop.f32.mrf.mxu0
    %v1160 = vadd.f32 0.0, %v1159
    %1161 = vmatmul.f32.gmra.mxu0 %v133
    %v1162 = vpop.f32.mrf.mxu0
    %v1163 = vadd.f32 0.0, %v1162
    %1164 = vmatmul.f32.gmra.mxu0 %v134
    %v1165 = vpop.f32.mrf.mxu0
    %v1166 = vadd.f32 0.0, %v1165
    %1167 = vmatmul.f32.gmra.mxu0 %v135
    %v1168 = vpop.f32.mrf.mxu0
    %v1169 = vadd.f32 0.0, %v1168
    %1170 = vmatmul.f32.gmra.mxu0 %v136
    %v1171 = vpop.f32.mrf.mxu0
    %v1172 = vadd.f32 0.0, %v1171
    %1173 = vmatmul.f32.gmra.mxu0 %v137
    %v1174 = vpop.f32.mrf.mxu0
    %v1175 = vadd.f32 0.0, %v1174
    %1176 = vmatmul.f32.gmra.mxu0 %v138
    %v1177 = vpop.f32.mrf.mxu0
    %v1178 = vadd.f32 0.0, %v1177
    %1179 = vmatmul.f32.gmra.mxu0 %v139
    %v1180 = vpop.f32.mrf.mxu0
    %v1181 = vadd.f32 0.0, %v1180
    %1182 = vmatmul.f32.gmra.mxu0 %v140
    %v1183 = vpop.f32.mrf.mxu0
    %v1184 = vadd.f32 0.0, %v1183
    %1185 = vmatmul.f32.gmra.mxu0 %v141
    %v1186 = vpop.f32.mrf.mxu0
    %v1187 = vadd.f32 0.0, %v1186
    %1188 = vmatmul.f32.gmra.mxu0 %v142
    %v1189 = vpop.f32.mrf.mxu0
    %v1190 = vadd.f32 0.0, %v1189
    %1191 = vdwg.mxu0
    %v1192 = vadd.f32 %v1062, %v1121
    %v1193 = vadd.f32 %v1063, %v1124
    %v1194 = vadd.f32 %v1064, %v1127
    %v1195 = vadd.f32 %v1065, %v1130
    %v1196 = vadd.f32 %v1066, %v1133
    %v1197 = vadd.f32 %v1067, %v1136
    %v1198 = vadd.f32 %v1068, %v1139
    %v1199 = vadd.f32 %v1069, %v1142
    %v1200 = vadd.f32 %v1070, %v1145
    %v1201 = vadd.f32 %v1071, %v1148
    %v1202 = vadd.f32 %v1072, %v1151
    %v1203 = vadd.f32 %v1073, %v1154
    %v1204 = vadd.f32 %v1074, %v1157
    %v1205 = vadd.f32 %v1075, %v1160
    %v1206 = vadd.f32 %v1076, %v1163
    %v1207 = vadd.f32 %v1077, %v1166
    %v1208 = vadd.f32 %v1078, %v1169
    %v1209 = vadd.f32 %v1079, %v1172
    %v1210 = vadd.f32 %v1080, %v1175
    %v1211 = vadd.f32 %v1081, %v1178
    %v1212 = vadd.f32 %v1082, %v1181
    %v1213 = vadd.f32 %v1083, %v1184
    %v1214 = vadd.f32 %v1084, %v1187
    %v1215 = vadd.f32 %v1085, %v1190
    %s1216 = scalar_lea.vmem [#allocation4], 512
    %v1217 = vld [vmem:[%s1216] sm:$0xff]
    %v1218 = vld [vmem:[%s1216 + $0x8] sm:$0xff]
    %v1219 = vld [vmem:[%s1216 + $0x10] sm:$0xff]
    %v1220 = vld [vmem:[%s1216 + $0x18] sm:$0xff]
    %v1221 = vld [vmem:[%s1216 + $0x20] sm:$0xff]
    %v1222 = vld [vmem:[%s1216 + $0x28] sm:$0xff]
    %v1223 = vld [vmem:[%s1216 + $0x30] sm:$0xff]
    %v1224 = vld [vmem:[%s1216 + $0x38] sm:$0xff]
    %v1225 = vld [vmem:[%s1216 + $0x40] sm:$0xff]
    %v1226 = vld [vmem:[%s1216 + $0x48] sm:$0xff]
    %v1227 = vld [vmem:[%s1216 + $0x50] sm:$0xff]
    %v1228 = vld [vmem:[%s1216 + $0x58] sm:$0xff]
    %v1229 = vld [vmem:[%s1216 + $0x60] sm:$0xff]
    %v1230 = vld [vmem:[%s1216 + $0x68] sm:$0xff]
    %v1231 = vld [vmem:[%s1216 + $0x70] sm:$0xff]
    %v1232 = vld [vmem:[%s1216 + $0x78] sm:$0xff]
    %1233 = vmatpush.msra.mxu0 %v1232
    %1234 = vmatpush.msra.mxu0 %v1231
    %1235 = vmatpush.msra.mxu0 %v1230
    %1236 = vmatpush.msra.mxu0 %v1229
    %1237 = vmatpush.msra.mxu0 %v1228
    %1238 = vmatpush.msra.mxu0 %v1227
    %1239 = vmatpush.msra.mxu0 %v1226
    %1240 = vmatpush.msra.mxu0 %v1225
    %1241 = vmatpush.msra.mxu0 %v1224
    %1242 = vmatpush.msra.mxu0 %v1223
    %1243 = vmatpush.msra.mxu0 %v1222
    %1244 = vmatpush.msra.mxu0 %v1221
    %1245 = vmatpush.msra.mxu0 %v1220
    %1246 = vmatpush.msra.mxu0 %v1219
    %1247 = vmatpush.msra.mxu0 %v1218
    %1248 = vmatpush.msra.mxu0 %v1217
    %1249 = vmatmul.f32.gmra.mxu0 %v120
    %v1250 = vpop.f32.mrf.mxu0
    %v1251 = vadd.f32 0.0, %v1250
    %1252 = vmatmul.f32.gmra.mxu0 %v121
    %v1253 = vpop.f32.mrf.mxu0
    %v1254 = vadd.f32 0.0, %v1253
    %1255 = vmatmul.f32.gmra.mxu0 %v122
    %v1256 = vpop.f32.mrf.mxu0
    %v1257 = vadd.f32 0.0, %v1256
    %1258 = vmatmul.f32.gmra.mxu0 %v123
    %v1259 = vpop.f32.mrf.mxu0
    %v1260 = vadd.f32 0.0, %v1259
    %1261 = vmatmul.f32.gmra.mxu0 %v124
    %v1262 = vpop.f32.mrf.mxu0
    %v1263 = vadd.f32 0.0, %v1262
    %1264 = vmatmul.f32.gmra.mxu0 %v125
    %v1265 = vpop.f32.mrf.mxu0
    %v1266 = vadd.f32 0.0, %v1265
    %1267 = vmatmul.f32.gmra.mxu0 %v126
    %v1268 = vpop.f32.mrf.mxu0
    %v1269 = vadd.f32 0.0, %v1268
    %1270 = vmatmul.f32.gmra.mxu0 %v127
    %v1271 = vpop.f32.mrf.mxu0
    %v1272 = vadd.f32 0.0, %v1271
    %1273 = vmatmul.f32.gmra.mxu0 %v128
    %v1274 = vpop.f32.mrf.mxu0
    %v1275 = vadd.f32 0.0, %v1274
    %1276 = vmatmul.f32.gmra.mxu0 %v129
    %v1277 = vpop.f32.mrf.mxu0
    %v1278 = vadd.f32 0.0, %v1277
    %1279 = vmatmul.f32.gmra.mxu0 %v130
    %v1280 = vpop.f32.mrf.mxu0
    %v1281 = vadd.f32 0.0, %v1280
    %1282 = vmatmul.f32.gmra.mxu0 %v131
    %v1283 = vpop.f32.mrf.mxu0
    %v1284 = vadd.f32 0.0, %v1283
    %1285 = vmatmul.f32.gmra.mxu0 %v132
    %v1286 = vpop.f32.mrf.mxu0
    %v1287 = vadd.f32 0.0, %v1286
    %1288 = vmatmul.f32.gmra.mxu0 %v133
    %v1289 = vpop.f32.mrf.mxu0
    %v1290 = vadd.f32 0.0, %v1289
    %1291 = vmatmul.f32.gmra.mxu0 %v134
    %v1292 = vpop.f32.mrf.mxu0
    %v1293 = vadd.f32 0.0, %v1292
    %1294 = vmatmul.f32.gmra.mxu0 %v135
    %v1295 = vpop.f32.mrf.mxu0
    %v1296 = vadd.f32 0.0, %v1295
    %1297 = vmatmul.f32.gmra.mxu0 %v136
    %v1298 = vpop.f32.mrf.mxu0
    %v1299 = vadd.f32 0.0, %v1298
    %1300 = vmatmul.f32.gmra.mxu0 %v137
    %v1301 = vpop.f32.mrf.mxu0
    %v1302 = vadd.f32 0.0, %v1301
    %1303 = vmatmul.f32.gmra.mxu0 %v138
    %v1304 = vpop.f32.mrf.mxu0
    %v1305 = vadd.f32 0.0, %v1304
    %1306 = vmatmul.f32.gmra.mxu0 %v139
    %v1307 = vpop.f32.mrf.mxu0
    %v1308 = vadd.f32 0.0, %v1307
    %1309 = vmatmul.f32.gmra.mxu0 %v140
    %v1310 = vpop.f32.mrf.mxu0
    %v1311 = vadd.f32 0.0, %v1310
    %1312 = vmatmul.f32.gmra.mxu0 %v141
    %v1313 = vpop.f32.mrf.mxu0
    %v1314 = vadd.f32 0.0, %v1313
    %1315 = vmatmul.f32.gmra.mxu0 %v142
    %v1316 = vpop.f32.mrf.mxu0
    %v1317 = vadd.f32 0.0, %v1316
    %1318 = vmatmul.f32.gmra.mxu0 %v143
    %v1319 = vpop.f32.mrf.mxu0
    %v1320 = vadd.f32 0.0, %v1319
    %1321 = vdwg.mxu0
    %v1322 = vadd.f32 %v1192, %v1251
    %v1323 = vadd.f32 %v1193, %v1254
    %v1324 = vadd.f32 %v1194, %v1257
    %v1325 = vadd.f32 %v1195, %v1260
    %v1326 = vadd.f32 %v1196, %v1263
    %v1327 = vadd.f32 %v1197, %v1266
    %v1328 = vadd.f32 %v1198, %v1269
    %v1329 = vadd.f32 %v1199, %v1272
    %v1330 = vadd.f32 %v1200, %v1275
    %v1331 = vadd.f32 %v1201, %v1278
    %v1332 = vadd.f32 %v1202, %v1281
    %v1333 = vadd.f32 %v1203, %v1284
    %v1334 = vadd.f32 %v1204, %v1287
    %v1335 = vadd.f32 %v1205, %v1290
    %v1336 = vadd.f32 %v1206, %v1293
    %v1337 = vadd.f32 %v1207, %v1296
    %v1338 = vadd.f32 %v1208, %v1299
    %v1339 = vadd.f32 %v1209, %v1302
    %v1340 = vadd.f32 %v1210, %v1305
    %v1341 = vadd.f32 %v1211, %v1308
    %v1342 = vadd.f32 %v1212, %v1311
    %v1343 = vadd.f32 %v1213, %v1314
    %v1344 = vadd.f32 %v1214, %v1317
    %v1345 = vadd.f32 %v1215, %v1320
    %v1346 = vmax.f32 %v721, %v1322
    %v1347 = vmax.f32 %v722, %v1323
    %v1348 = vmax.f32 %v723, %v1324
    %v1349 = vmax.f32 %v724, %v1325
    %v1350 = vmax.f32 %v725, %v1326
    %v1351 = vmax.f32 %v726, %v1327
    %v1352 = vmax.f32 %v727, %v1328
    %v1353 = vmax.f32 %v728, %v1329
    %v1354 = vmax.f32 %v729, %v1330
    %v1355 = vmax.f32 %v730, %v1331
    %v1356 = vmax.f32 %v731, %v1332
    %v1357 = vmax.f32 %v732, %v1333
    %v1358 = vmax.f32 %v733, %v1334
    %v1359 = vmax.f32 %v734, %v1335
    %v1360 = vmax.f32 %v735, %v1336
    %v1361 = vmax.f32 %v736, %v1337
    %v1362 = vmax.f32 %v737, %v1338
    %v1363 = vmax.f32 %v738, %v1339
    %v1364 = vmax.f32 %v739, %v1340
    %v1365 = vmax.f32 %v740, %v1341
    %v1366 = vmax.f32 %v741, %v1342
    %v1367 = vmax.f32 %v742, %v1343
    %v1368 = vmax.f32 %v743, %v1344
    %v1369 = vmax.f32 %v744, %v1345
    %v1370 = vld [vmem:[%s7] sm:$0x1]
    %v1372 = vperm.slane %v1370, 0
    %v1374 = vadd.f32 %v1346, %v1372
    %v1375 = vadd.f32 %v1347, %v1372
    %v1376 = vadd.f32 %v1348, %v1372
    %v1377 = vadd.f32 %v1349, %v1372
    %v1378 = vadd.f32 %v1350, %v1372
    %v1379 = vadd.f32 %v1351, %v1372
    %v1380 = vadd.f32 %v1352, %v1372
    %v1381 = vadd.f32 %v1353, %v1372
    %v1382 = vadd.f32 %v1354, %v1372
    %v1383 = vadd.f32 %v1355, %v1372
    %v1384 = vadd.f32 %v1356, %v1372
    %v1385 = vadd.f32 %v1357, %v1372
    %v1386 = vadd.f32 %v1358, %v1372
    %v1387 = vadd.f32 %v1359, %v1372
    %v1388 = vadd.f32 %v1360, %v1372
    %v1389 = vadd.f32 %v1361, %v1372
    %v1390 = vadd.f32 %v1362, %v1372
    %v1391 = vadd.f32 %v1363, %v1372
    %v1392 = vadd.f32 %v1364, %v1372
    %v1393 = vadd.f32 %v1365, %v1372
    %v1394 = vadd.f32 %v1366, %v1372
    %v1395 = vadd.f32 %v1367, %v1372
    %v1396 = vadd.f32 %v1368, %v1372
    %v1397 = vadd.f32 %v1369, %v1372
    %v1398 = vmax.f32 %v1374, 0.0
    %v1399 = vmax.f32 %v1375, 0.0
    %v1400 = vmax.f32 %v1376, 0.0
    %v1401 = vmax.f32 %v1377, 0.0
    %v1402 = vmax.f32 %v1378, 0.0
    %v1403 = vmax.f32 %v1379, 0.0
    %v1404 = vmax.f32 %v1380, 0.0
    %v1405 = vmax.f32 %v1381, 0.0
    %v1406 = vmax.f32 %v1382, 0.0
    %v1407 = vmax.f32 %v1383, 0.0
    %v1408 = vmax.f32 %v1384, 0.0
    %v1409 = vmax.f32 %v1385, 0.0
    %v1410 = vmax.f32 %v1386, 0.0
    %v1411 = vmax.f32 %v1387, 0.0
    %v1412 = vmax.f32 %v1388, 0.0
    %v1413 = vmax.f32 %v1389, 0.0
    %v1414 = vmax.f32 %v1390, 0.0
    %v1415 = vmax.f32 %v1391, 0.0
    %v1416 = vmax.f32 %v1392, 0.0
    %v1417 = vmax.f32 %v1393, 0.0
    %v1418 = vmax.f32 %v1394, 0.0
    %v1419 = vmax.f32 %v1395, 0.0
    %v1420 = vmax.f32 %v1396, 0.0
    %v1421 = vmax.f32 %v1397, 0.0
    %v1422 = vmax.f32 %v1398, %v1399
    %v1423 = vmax.f32 %v1400, %v1401
    %v1424 = vmax.f32 %v1402, %v1403
    %v1425 = vmax.f32 %v1404, %v1405
    %v1426 = vmax.f32 %v1406, %v1407
    %v1427 = vmax.f32 %v1408, %v1409
    %v1428 = vmax.f32 %v1410, %v1411
    %v1429 = vmax.f32 %v1412, %v1413
    %v1430 = vmax.f32 %v1414, %v1415
    %v1431 = vmax.f32 %v1416, %v1417
    %v1432 = vmax.f32 %v1418, %v1419
    %v1433 = vmax.f32 %v1420, %v1421
    %v1434 = vld [vmem:[#allocation6] sm:$0xff]
    %v1435 = vld [vmem:[#allocation6 + $0x8] sm:$0xff]
    %v1436 = vld [vmem:[#allocation6 + $0x10] sm:$0xff]
    %v1437 = vld [vmem:[#allocation6 + $0x18] sm:$0xff]
    %v1438 = vld [vmem:[#allocation6 + $0x20] sm:$0xff]
    %v1439 = vld [vmem:[#allocation6 + $0x28] sm:$0xff]
    %v1440 = vld [vmem:[#allocation6 + $0x30] sm:$0xff]
    %v1441 = vld [vmem:[#allocation6 + $0x38] sm:$0xff]
    %v1442 = vld [vmem:[#allocation6 + $0x40] sm:$0xff]
    %v1443 = vld [vmem:[#allocation6 + $0x48] sm:$0xff]
    %v1444 = vld [vmem:[#allocation6 + $0x50] sm:$0xff]
    %v1445 = vld [vmem:[#allocation6 + $0x58] sm:$0xff]
    %v1446 = vld [vmem:[#allocation6 + $0x60] sm:$0xff]
    %v1447 = vld [vmem:[#allocation6 + $0x68] sm:$0xff]
    %v1448 = vld [vmem:[#allocation6 + $0x70] sm:$0xff]
    %v1449 = vld [vmem:[#allocation6 + $0x78] sm:$0xff]
    %s1450 = scalar_lea.vmem [#allocation6], 128
    %v1451 = vld [vmem:[%s1450] sm:$0xff]
    %v1452 = vld [vmem:[%s1450 + $0x8] sm:$0xff]
    %v1453 = vld [vmem:[%s1450 + $0x10] sm:$0xff]
    %v1454 = vld [vmem:[%s1450 + $0x18] sm:$0xff]
    %v1455 = vld [vmem:[%s1450 + $0x20] sm:$0xff]
    %v1456 = vld [vmem:[%s1450 + $0x28] sm:$0xff]
    %v1457 = vld [vmem:[%s1450 + $0x30] sm:$0xff]
    %v1458 = vld [vmem:[%s1450 + $0x38] sm:$0xff]
    %v1459 = vld [vmem:[%s1450 + $0x40] sm:$0xff]
    %v1460 = vld [vmem:[%s1450 + $0x48] sm:$0xff]
    %v1461 = vld [vmem:[%s1450 + $0x50] sm:$0xff]
    %v1462 = vld [vmem:[%s1450 + $0x58] sm:$0xff]
    %v1463 = vld [vmem:[%s1450 + $0x60] sm:$0xff]
    %v1464 = vld [vmem:[%s1450 + $0x68] sm:$0xff]
    %v1465 = vld [vmem:[%s1450 + $0x70] sm:$0xff]
    %v1466 = vld [vmem:[%s1450 + $0x78] sm:$0xff]
    %1467 = vmatpush.msra.mxu0 %v1466
    %1468 = vmatpush.msra.mxu0 %v1465
    %1469 = vmatpush.msra.mxu0 %v1464
    %1470 = vmatpush.msra.mxu0 %v1463
    %1471 = vmatpush.msra.mxu0 %v1462
    %1472 = vmatpush.msra.mxu0 %v1461
    %1473 = vmatpush.msra.mxu0 %v1460
    %1474 = vmatpush.msra.mxu0 %v1459
    %1475 = vmatpush.msra.mxu0 %v1458
    %1476 = vmatpush.msra.mxu0 %v1457
    %1477 = vmatpush.msra.mxu0 %v1456
    %1478 = vmatpush.msra.mxu0 %v1455
    %1479 = vmatpush.msra.mxu0 %v1454
    %1480 = vmatpush.msra.mxu0 %v1453
    %1481 = vmatpush.msra.mxu0 %v1452
    %1482 = vmatpush.msra.mxu0 %v1451
    %1483 = vmatmul.f32.gmra.mxu0 %v1423
    %v1484 = vpop.f32.mrf.mxu0
    %v1485 = vadd.f32 0.0, %v1484
    %1486 = vmatmul.f32.gmra.mxu0 %v1424
    %v1487 = vpop.f32.mrf.mxu0
    %v1488 = vadd.f32 0.0, %v1487
    %1489 = vmatmul.f32.gmra.mxu0 %v1425
    %v1490 = vpop.f32.mrf.mxu0
    %v1491 = vadd.f32 0.0, %v1490
    %1492 = vmatmul.f32.gmra.mxu0 %v1426
    %v1493 = vpop.f32.mrf.mxu0
    %v1494 = vadd.f32 0.0, %v1493
    %1495 = vmatmul.f32.gmra.mxu0 %v1427
    %v1496 = vpop.f32.mrf.mxu0
    %v1497 = vadd.f32 0.0, %v1496
    %1498 = vmatmul.f32.gmra.mxu0 %v1428
    %v1499 = vpop.f32.mrf.mxu0
    %v1500 = vadd.f32 0.0, %v1499
    %1501 = vmatmul.f32.gmra.mxu0 %v1429
    %v1502 = vpop.f32.mrf.mxu0
    %v1503 = vadd.f32 0.0, %v1502
    %1504 = vmatmul.f32.gmra.mxu0 %v1430
    %v1505 = vpop.f32.mrf.mxu0
    %v1506 = vadd.f32 0.0, %v1505
    %1507 = vdwg.mxu0
    %1508 = vmatpush.msra.mxu0 %v1449
    %1509 = vmatpush.msra.mxu0 %v1448
    %1510 = vmatpush.msra.mxu0 %v1447
    %1511 = vmatpush.msra.mxu0 %v1446
    %1512 = vmatpush.msra.mxu0 %v1445
    %1513 = vmatpush.msra.mxu0 %v1444
    %1514 = vmatpush.msra.mxu0 %v1443
    %1515 = vmatpush.msra.mxu0 %v1442
    %1516 = vmatpush.msra.mxu0 %v1441
    %1517 = vmatpush.msra.mxu0 %v1440
    %1518 = vmatpush.msra.mxu0 %v1439
    %1519 = vmatpush.msra.mxu0 %v1438
    %1520 = vmatpush.msra.mxu0 %v1437
    %1521 = vmatpush.msra.mxu0 %v1436
    %1522 = vmatpush.msra.mxu0 %v1435
    %1523 = vmatpush.msra.mxu0 %v1434
    %1524 = vmatmul.f32.gmra.mxu0 %v1422
    %v1525 = vpop.f32.mrf.mxu0
    %v1526 = vadd.f32 %v1485, %v1525
    %1527 = vmatmul.f32.gmra.mxu0 %v1423
    %v1528 = vpop.f32.mrf.mxu0
    %v1529 = vadd.f32 %v1488, %v1528
    %1530 = vmatmul.f32.gmra.mxu0 %v1424
    %v1531 = vpop.f32.mrf.mxu0
    %v1532 = vadd.f32 %v1491, %v1531
    %1533 = vmatmul.f32.gmra.mxu0 %v1425
    %v1534 = vpop.f32.mrf.mxu0
    %v1535 = vadd.f32 %v1494, %v1534
    %1536 = vmatmul.f32.gmra.mxu0 %v1426
    %v1537 = vpop.f32.mrf.mxu0
    %v1538 = vadd.f32 %v1497, %v1537
    %1539 = vmatmul.f32.gmra.mxu0 %v1427
    %v1540 = vpop.f32.mrf.mxu0
    %v1541 = vadd.f32 %v1500, %v1540
    %1542 = vmatmul.f32.gmra.mxu0 %v1428
    %v1543 = vpop.f32.mrf.mxu0
    %v1544 = vadd.f32 %v1503, %v1543
    %1545 = vmatmul.f32.gmra.mxu0 %v1429
    %v1546 = vpop.f32.mrf.mxu0
    %v1547 = vadd.f32 %v1506, %v1546
    %1548 = vdwg.mxu0
    %s1549 = scalar_lea.vmem [#allocation6], 256
    %v1550 = vld [vmem:[%s1549] sm:$0xff]
    %v1551 = vld [vmem:[%s1549 + $0x8] sm:$0xff]
    %v1552 = vld [vmem:[%s1549 + $0x10] sm:$0xff]
    %v1553 = vld [vmem:[%s1549 + $0x18] sm:$0xff]
    %v1554 = vld [vmem:[%s1549 + $0x20] sm:$0xff]
    %v1555 = vld [vmem:[%s1549 + $0x28] sm:$0xff]
    %v1556 = vld [vmem:[%s1549 + $0x30] sm:$0xff]
    %v1557 = vld [vmem:[%s1549 + $0x38] sm:$0xff]
    %v1558 = vld [vmem:[%s1549 + $0x40] sm:$0xff]
    %v1559 = vld [vmem:[%s1549 + $0x48] sm:$0xff]
    %v1560 = vld [vmem:[%s1549 + $0x50] sm:$0xff]
    %v1561 = vld [vmem:[%s1549 + $0x58] sm:$0xff]
    %v1562 = vld [vmem:[%s1549 + $0x60] sm:$0xff]
    %v1563 = vld [vmem:[%s1549 + $0x68] sm:$0xff]
    %v1564 = vld [vmem:[%s1549 + $0x70] sm:$0xff]
    %v1565 = vld [vmem:[%s1549 + $0x78] sm:$0xff]
    %1566 = vmatpush.msra.mxu0 %v1565
    %1567 = vmatpush.msra.mxu0 %v1564
    %1568 = vmatpush.msra.mxu0 %v1563
    %1569 = vmatpush.msra.mxu0 %v1562
    %1570 = vmatpush.msra.mxu0 %v1561
    %1571 = vmatpush.msra.mxu0 %v1560
    %1572 = vmatpush.msra.mxu0 %v1559
    %1573 = vmatpush.msra.mxu0 %v1558
    %1574 = vmatpush.msra.mxu0 %v1557
    %1575 = vmatpush.msra.mxu0 %v1556
    %1576 = vmatpush.msra.mxu0 %v1555
    %1577 = vmatpush.msra.mxu0 %v1554
    %1578 = vmatpush.msra.mxu0 %v1553
    %1579 = vmatpush.msra.mxu0 %v1552
    %1580 = vmatpush.msra.mxu0 %v1551
    %1581 = vmatpush.msra.mxu0 %v1550
    %1582 = vmatmul.f32.gmra.mxu0 %v1424
    %v1583 = vpop.f32.mrf.mxu0
    %v1584 = vadd.f32 0.0, %v1583
    %1585 = vmatmul.f32.gmra.mxu0 %v1425
    %v1586 = vpop.f32.mrf.mxu0
    %v1587 = vadd.f32 0.0, %v1586
    %1588 = vmatmul.f32.gmra.mxu0 %v1426
    %v1589 = vpop.f32.mrf.mxu0
    %v1590 = vadd.f32 0.0, %v1589
    %1591 = vmatmul.f32.gmra.mxu0 %v1427
    %v1592 = vpop.f32.mrf.mxu0
    %v1593 = vadd.f32 0.0, %v1592
    %1594 = vmatmul.f32.gmra.mxu0 %v1428
    %v1595 = vpop.f32.mrf.mxu0
    %v1596 = vadd.f32 0.0, %v1595
    %1597 = vmatmul.f32.gmra.mxu0 %v1429
    %v1598 = vpop.f32.mrf.mxu0
    %v1599 = vadd.f32 0.0, %v1598
    %1600 = vmatmul.f32.gmra.mxu0 %v1430
    %v1601 = vpop.f32.mrf.mxu0
    %v1602 = vadd.f32 0.0, %v1601
    %1603 = vmatmul.f32.gmra.mxu0 %v1431
    %v1604 = vpop.f32.mrf.mxu0
    %v1605 = vadd.f32 0.0, %v1604
    %1606 = vdwg.mxu0
    %v1607 = vadd.f32 %v1526, %v1584
    %v1608 = vadd.f32 %v1529, %v1587
    %v1609 = vadd.f32 %v1532, %v1590
    %v1610 = vadd.f32 %v1535, %v1593
    %v1611 = vadd.f32 %v1538, %v1596
    %v1612 = vadd.f32 %v1541, %v1599
    %v1613 = vadd.f32 %v1544, %v1602
    %v1614 = vadd.f32 %v1547, %v1605
    %s1615 = scalar_lea.vmem [#allocation6], 384
    %v1616 = vld [vmem:[%s1615] sm:$0xff]
    %v1617 = vld [vmem:[%s1615 + $0x8] sm:$0xff]
    %v1618 = vld [vmem:[%s1615 + $0x10] sm:$0xff]
    %v1619 = vld [vmem:[%s1615 + $0x18] sm:$0xff]
    %v1620 = vld [vmem:[%s1615 + $0x20] sm:$0xff]
    %v1621 = vld [vmem:[%s1615 + $0x28] sm:$0xff]
    %v1622 = vld [vmem:[%s1615 + $0x30] sm:$0xff]
    %v1623 = vld [vmem:[%s1615 + $0x38] sm:$0xff]
    %v1624 = vld [vmem:[%s1615 + $0x40] sm:$0xff]
    %v1625 = vld [vmem:[%s1615 + $0x48] sm:$0xff]
    %v1626 = vld [vmem:[%s1615 + $0x50] sm:$0xff]
    %v1627 = vld [vmem:[%s1615 + $0x58] sm:$0xff]
    %v1628 = vld [vmem:[%s1615 + $0x60] sm:$0xff]
    %v1629 = vld [vmem:[%s1615 + $0x68] sm:$0xff]
    %v1630 = vld [vmem:[%s1615 + $0x70] sm:$0xff]
    %v1631 = vld [vmem:[%s1615 + $0x78] sm:$0xff]
    %1632 = vmatpush.msra.mxu0 %v1631
    %1633 = vmatpush.msra.mxu0 %v1630
    %1634 = vmatpush.msra.mxu0 %v1629
    %1635 = vmatpush.msra.mxu0 %v1628
    %1636 = vmatpush.msra.mxu0 %v1627
    %1637 = vmatpush.msra.mxu0 %v1626
    %1638 = vmatpush.msra.mxu0 %v1625
    %1639 = vmatpush.msra.mxu0 %v1624
    %1640 = vmatpush.msra.mxu0 %v1623
    %1641 = vmatpush.msra.mxu0 %v1622
    %1642 = vmatpush.msra.mxu0 %v1621
    %1643 = vmatpush.msra.mxu0 %v1620
    %1644 = vmatpush.msra.mxu0 %v1619
    %1645 = vmatpush.msra.mxu0 %v1618
    %1646 = vmatpush.msra.mxu0 %v1617
    %1647 = vmatpush.msra.mxu0 %v1616
    %1648 = vmatmul.f32.gmra.mxu0 %v1425
    %v1649 = vpop.f32.mrf.mxu0
    %v1650 = vadd.f32 0.0, %v1649
    %1651 = vmatmul.f32.gmra.mxu0 %v1426
    %v1652 = vpop.f32.mrf.mxu0
    %v1653 = vadd.f32 0.0, %v1652
    %1654 = vmatmul.f32.gmra.mxu0 %v1427
    %v1655 = vpop.f32.mrf.mxu0
    %v1656 = vadd.f32 0.0, %v1655
    %1657 = vmatmul.f32.gmra.mxu0 %v1428
    %v1658 = vpop.f32.mrf.mxu0
    %v1659 = vadd.f32 0.0, %v1658
    %1660 = vmatmul.f32.gmra.mxu0 %v1429
    %v1661 = vpop.f32.mrf.mxu0
    %v1662 = vadd.f32 0.0, %v1661
    %1663 = vmatmul.f32.gmra.mxu0 %v1430
    %v1664 = vpop.f32.mrf.mxu0
    %v1665 = vadd.f32 0.0, %v1664
    %1666 = vmatmul.f32.gmra.mxu0 %v1431
    %v1667 = vpop.f32.mrf.mxu0
    %v1668 = vadd.f32 0.0, %v1667
    %1669 = vmatmul.f32.gmra.mxu0 %v1432
    %v1670 = vpop.f32.mrf.mxu0
    %v1671 = vadd.f32 0.0, %v1670
    %1672 = vdwg.mxu0
    %v1673 = vadd.f32 %v1607, %v1650
    %v1674 = vadd.f32 %v1608, %v1653
    %v1675 = vadd.f32 %v1609, %v1656
    %v1676 = vadd.f32 %v1610, %v1659
    %v1677 = vadd.f32 %v1611, %v1662
    %v1678 = vadd.f32 %v1612, %v1665
    %v1679 = vadd.f32 %v1613, %v1668
    %v1680 = vadd.f32 %v1614, %v1671
    %s1681 = scalar_lea.vmem [#allocation6], 512
    %v1682 = vld [vmem:[%s1681] sm:$0xff]
    %v1683 = vld [vmem:[%s1681 + $0x8] sm:$0xff]
    %v1684 = vld [vmem:[%s1681 + $0x10] sm:$0xff]
    %v1685 = vld [vmem:[%s1681 + $0x18] sm:$0xff]
    %v1686 = vld [vmem:[%s1681 + $0x20] sm:$0xff]
    %v1687 = vld [vmem:[%s1681 + $0x28] sm:$0xff]
    %v1688 = vld [vmem:[%s1681 + $0x30] sm:$0xff]
    %v1689 = vld [vmem:[%s1681 + $0x38] sm:$0xff]
    %v1690 = vld [vmem:[%s1681 + $0x40] sm:$0xff]
    %v1691 = vld [vmem:[%s1681 + $0x48] sm:$0xff]
    %v1692 = vld [vmem:[%s1681 + $0x50] sm:$0xff]
    %v1693 = vld [vmem:[%s1681 + $0x58] sm:$0xff]
    %v1694 = vld [vmem:[%s1681 + $0x60] sm:$0xff]
    %v1695 = vld [vmem:[%s1681 + $0x68] sm:$0xff]
    %v1696 = vld [vmem:[%s1681 + $0x70] sm:$0xff]
    %v1697 = vld [vmem:[%s1681 + $0x78] sm:$0xff]
    %1698 = vmatpush.msra.mxu0 %v1697
    %1699 = vmatpush.msra.mxu0 %v1696
    %1700 = vmatpush.msra.mxu0 %v1695
    %1701 = vmatpush.msra.mxu0 %v1694
    %1702 = vmatpush.msra.mxu0 %v1693
    %1703 = vmatpush.msra.mxu0 %v1692
    %1704 = vmatpush.msra.mxu0 %v1691
    %1705 = vmatpush.msra.mxu0 %v1690
    %1706 = vmatpush.msra.mxu0 %v1689
    %1707 = vmatpush.msra.mxu0 %v1688
    %1708 = vmatpush.msra.mxu0 %v1687
    %1709 = vmatpush.msra.mxu0 %v1686
    %1710 = vmatpush.msra.mxu0 %v1685
    %1711 = vmatpush.msra.mxu0 %v1684
    %1712 = vmatpush.msra.mxu0 %v1683
    %1713 = vmatpush.msra.mxu0 %v1682
    %1714 = vmatmul.f32.gmra.mxu0 %v1426
    %v1715 = vpop.f32.mrf.mxu0
    %v1716 = vadd.f32 0.0, %v1715
    %1717 = vmatmul.f32.gmra.mxu0 %v1427
    %v1718 = vpop.f32.mrf.mxu0
    %v1719 = vadd.f32 0.0, %v1718
    %1720 = vmatmul.f32.gmra.mxu0 %v1428
    %v1721 = vpop.f32.mrf.mxu0
    %v1722 = vadd.f32 0.0, %v1721
    %1723 = vmatmul.f32.gmra.mxu0 %v1429
    %v1724 = vpop.f32.mrf.mxu0
    %v1725 = vadd.f32 0.0, %v1724
    %1726 = vmatmul.f32.gmra.mxu0 %v1430
    %v1727 = vpop.f32.mrf.mxu0
    %v1728 = vadd.f32 0.0, %v1727
    %1729 = vmatmul.f32.gmra.mxu0 %v1431
    %v1730 = vpop.f32.mrf.mxu0
    %v1731 = vadd.f32 0.0, %v1730
    %1732 = vmatmul.f32.gmra.mxu0 %v1432
    %v1733 = vpop.f32.mrf.mxu0
    %v1734 = vadd.f32 0.0, %v1733
    %1735 = vmatmul.f32.gmra.mxu0 %v1433
    %v1736 = vpop.f32.mrf.mxu0
    %v1737 = vadd.f32 0.0, %v1736
    %1738 = vdwg.mxu0
    %v1739 = vadd.f32 %v1673, %v1716
    %v1740 = vadd.f32 %v1674, %v1719
    %v1741 = vadd.f32 %v1675, %v1722
    %v1742 = vadd.f32 %v1676, %v1725
    %v1743 = vadd.f32 %v1677, %v1728
    %v1744 = vadd.f32 %v1678, %v1731
    %v1745 = vadd.f32 %v1679, %v1734
    %v1746 = vadd.f32 %v1680, %v1737
    %v1747 = vld [vmem:[#allocation7] sm:$0xff]
    %v1748 = vld [vmem:[#allocation7 + $0x8] sm:$0xff]
    %v1749 = vld [vmem:[#allocation7 + $0x10] sm:$0xff]
    %v1750 = vld [vmem:[#allocation7 + $0x18] sm:$0xff]
    %v1751 = vld [vmem:[#allocation7 + $0x20] sm:$0xff]
    %v1752 = vld [vmem:[#allocation7 + $0x28] sm:$0xff]
    %v1753 = vld [vmem:[#allocation7 + $0x30] sm:$0xff]
    %v1754 = vld [vmem:[#allocation7 + $0x38] sm:$0xff]
    %v1755 = vld [vmem:[#allocation7 + $0x40] sm:$0xff]
    %v1756 = vld [vmem:[#allocation7 + $0x48] sm:$0xff]
    %v1757 = vld [vmem:[#allocation7 + $0x50] sm:$0xff]
    %v1758 = vld [vmem:[#allocation7 + $0x58] sm:$0xff]
    %v1759 = vld [vmem:[#allocation7 + $0x60] sm:$0xff]
    %v1760 = vld [vmem:[#allocation7 + $0x68] sm:$0xff]
    %v1761 = vld [vmem:[#allocation7 + $0x70] sm:$0xff]
    %v1762 = vld [vmem:[#allocation7 + $0x78] sm:$0xff]
    %s1763 = scalar_lea.vmem [#allocation7], 128
    %v1764 = vld [vmem:[%s1763] sm:$0xff]
    %v1765 = vld [vmem:[%s1763 + $0x8] sm:$0xff]
    %v1766 = vld [vmem:[%s1763 + $0x10] sm:$0xff]
    %v1767 = vld [vmem:[%s1763 + $0x18] sm:$0xff]
    %v1768 = vld [vmem:[%s1763 + $0x20] sm:$0xff]
    %v1769 = vld [vmem:[%s1763 + $0x28] sm:$0xff]
    %v1770 = vld [vmem:[%s1763 + $0x30] sm:$0xff]
    %v1771 = vld [vmem:[%s1763 + $0x38] sm:$0xff]
    %v1772 = vld [vmem:[%s1763 + $0x40] sm:$0xff]
    %v1773 = vld [vmem:[%s1763 + $0x48] sm:$0xff]
    %v1774 = vld [vmem:[%s1763 + $0x50] sm:$0xff]
    %v1775 = vld [vmem:[%s1763 + $0x58] sm:$0xff]
    %v1776 = vld [vmem:[%s1763 + $0x60] sm:$0xff]
    %v1777 = vld [vmem:[%s1763 + $0x68] sm:$0xff]
    %v1778 = vld [vmem:[%s1763 + $0x70] sm:$0xff]
    %v1779 = vld [vmem:[%s1763 + $0x78] sm:$0xff]
    %1780 = vmatpush.msra.mxu0 %v1779
    %1781 = vmatpush.msra.mxu0 %v1778
    %1782 = vmatpush.msra.mxu0 %v1777
    %1783 = vmatpush.msra.mxu0 %v1776
    %1784 = vmatpush.msra.mxu0 %v1775
    %1785 = vmatpush.msra.mxu0 %v1774
    %1786 = vmatpush.msra.mxu0 %v1773
    %1787 = vmatpush.msra.mxu0 %v1772
    %1788 = vmatpush.msra.mxu0 %v1771
    %1789 = vmatpush.msra.mxu0 %v1770
    %1790 = vmatpush.msra.mxu0 %v1769
    %1791 = vmatpush.msra.mxu0 %v1768
    %1792 = vmatpush.msra.mxu0 %v1767
    %1793 = vmatpush.msra.mxu0 %v1766
    %1794 = vmatpush.msra.mxu0 %v1765
    %1795 = vmatpush.msra.mxu0 %v1764
    %1796 = vmatmul.f32.gmra.mxu0 %v1423
    %v1797 = vpop.f32.mrf.mxu0
    %v1798 = vadd.f32 0.0, %v1797
    %1799 = vmatmul.f32.gmra.mxu0 %v1424
    %v1800 = vpop.f32.mrf.mxu0
    %v1801 = vadd.f32 0.0, %v1800
    %1802 = vmatmul.f32.gmra.mxu0 %v1425
    %v1803 = vpop.f32.mrf.mxu0
    %v1804 = vadd.f32 0.0, %v1803
    %1805 = vmatmul.f32.gmra.mxu0 %v1426
    %v1806 = vpop.f32.mrf.mxu0
    %v1807 = vadd.f32 0.0, %v1806
    %1808 = vmatmul.f32.gmra.mxu0 %v1427
    %v1809 = vpop.f32.mrf.mxu0
    %v1810 = vadd.f32 0.0, %v1809
    %1811 = vmatmul.f32.gmra.mxu0 %v1428
    %v1812 = vpop.f32.mrf.mxu0
    %v1813 = vadd.f32 0.0, %v1812
    %1814 = vmatmul.f32.gmra.mxu0 %v1429
    %v1815 = vpop.f32.mrf.mxu0
    %v1816 = vadd.f32 0.0, %v1815
    %1817 = vmatmul.f32.gmra.mxu0 %v1430
    %v1818 = vpop.f32.mrf.mxu0
    %v1819 = vadd.f32 0.0, %v1818
    %1820 = vdwg.mxu0
    %1821 = vmatpush.msra.mxu0 %v1762
    %1822 = vmatpush.msra.mxu0 %v1761
    %1823 = vmatpush.msra.mxu0 %v1760
    %1824 = vmatpush.msra.mxu0 %v1759
    %1825 = vmatpush.msra.mxu0 %v1758
    %1826 = vmatpush.msra.mxu0 %v1757
    %1827 = vmatpush.msra.mxu0 %v1756
    %1828 = vmatpush.msra.mxu0 %v1755
    %1829 = vmatpush.msra.mxu0 %v1754
    %1830 = vmatpush.msra.mxu0 %v1753
    %1831 = vmatpush.msra.mxu0 %v1752
    %1832 = vmatpush.msra.mxu0 %v1751
    %1833 = vmatpush.msra.mxu0 %v1750
    %1834 = vmatpush.msra.mxu0 %v1749
    %1835 = vmatpush.msra.mxu0 %v1748
    %1836 = vmatpush.msra.mxu0 %v1747
    %1837 = vmatmul.f32.gmra.mxu0 %v1422
    %v1838 = vpop.f32.mrf.mxu0
    %v1839 = vadd.f32 %v1798, %v1838
    %1840 = vmatmul.f32.gmra.mxu0 %v1423
    %v1841 = vpop.f32.mrf.mxu0
    %v1842 = vadd.f32 %v1801, %v1841
    %1843 = vmatmul.f32.gmra.mxu0 %v1424
    %v1844 = vpop.f32.mrf.mxu0
    %v1845 = vadd.f32 %v1804, %v1844
    %1846 = vmatmul.f32.gmra.mxu0 %v1425
    %v1847 = vpop.f32.mrf.mxu0
    %v1848 = vadd.f32 %v1807, %v1847
    %1849 = vmatmul.f32.gmra.mxu0 %v1426
    %v1850 = vpop.f32.mrf.mxu0
    %v1851 = vadd.f32 %v1810, %v1850
    %1852 = vmatmul.f32.gmra.mxu0 %v1427
    %v1853 = vpop.f32.mrf.mxu0
    %v1854 = vadd.f32 %v1813, %v1853
    %1855 = vmatmul.f32.gmra.mxu0 %v1428
    %v1856 = vpop.f32.mrf.mxu0
    %v1857 = vadd.f32 %v1816, %v1856
    %1858 = vmatmul.f32.gmra.mxu0 %v1429
    %v1859 = vpop.f32.mrf.mxu0
    %v1860 = vadd.f32 %v1819, %v1859
    %1861 = vdwg.mxu0
    %s1862 = scalar_lea.vmem [#allocation7], 256
    %v1863 = vld [vmem:[%s1862] sm:$0xff]
    %v1864 = vld [vmem:[%s1862 + $0x8] sm:$0xff]
    %v1865 = vld [vmem:[%s1862 + $0x10] sm:$0xff]
    %v1866 = vld [vmem:[%s1862 + $0x18] sm:$0xff]
    %v1867 = vld [vmem:[%s1862 + $0x20] sm:$0xff]
    %v1868 = vld [vmem:[%s1862 + $0x28] sm:$0xff]
    %v1869 = vld [vmem:[%s1862 + $0x30] sm:$0xff]
    %v1870 = vld [vmem:[%s1862 + $0x38] sm:$0xff]
    %v1871 = vld [vmem:[%s1862 + $0x40] sm:$0xff]
    %v1872 = vld [vmem:[%s1862 + $0x48] sm:$0xff]
    %v1873 = vld [vmem:[%s1862 + $0x50] sm:$0xff]
    %v1874 = vld [vmem:[%s1862 + $0x58] sm:$0xff]
    %v1875 = vld [vmem:[%s1862 + $0x60] sm:$0xff]
    %v1876 = vld [vmem:[%s1862 + $0x68] sm:$0xff]
    %v1877 = vld [vmem:[%s1862 + $0x70] sm:$0xff]
    %v1878 = vld [vmem:[%s1862 + $0x78] sm:$0xff]
    %1879 = vmatpush.msra.mxu0 %v1878
    %1880 = vmatpush.msra.mxu0 %v1877
    %1881 = vmatpush.msra.mxu0 %v1876
    %1882 = vmatpush.msra.mxu0 %v1875
    %1883 = vmatpush.msra.mxu0 %v1874
    %1884 = vmatpush.msra.mxu0 %v1873
    %1885 = vmatpush.msra.mxu0 %v1872
    %1886 = vmatpush.msra.mxu0 %v1871
    %1887 = vmatpush.msra.mxu0 %v1870
    %1888 = vmatpush.msra.mxu0 %v1869
    %1889 = vmatpush.msra.mxu0 %v1868
    %1890 = vmatpush.msra.mxu0 %v1867
    %1891 = vmatpush.msra.mxu0 %v1866
    %1892 = vmatpush.msra.mxu0 %v1865
    %1893 = vmatpush.msra.mxu0 %v1864
    %1894 = vmatpush.msra.mxu0 %v1863
    %1895 = vmatmul.f32.gmra.mxu0 %v1424
    %v1896 = vpop.f32.mrf.mxu0
    %v1897 = vadd.f32 0.0, %v1896
    %1898 = vmatmul.f32.gmra.mxu0 %v1425
    %v1899 = vpop.f32.mrf.mxu0
    %v1900 = vadd.f32 0.0, %v1899
    %1901 = vmatmul.f32.gmra.mxu0 %v1426
    %v1902 = vpop.f32.mrf.mxu0
    %v1903 = vadd.f32 0.0, %v1902
    %1904 = vmatmul.f32.gmra.mxu0 %v1427
    %v1905 = vpop.f32.mrf.mxu0
    %v1906 = vadd.f32 0.0, %v1905
    %1907 = vmatmul.f32.gmra.mxu0 %v1428
    %v1908 = vpop.f32.mrf.mxu0
    %v1909 = vadd.f32 0.0, %v1908
    %1910 = vmatmul.f32.gmra.mxu0 %v1429
    %v1911 = vpop.f32.mrf.mxu0
    %v1912 = vadd.f32 0.0, %v1911
    %1913 = vmatmul.f32.gmra.mxu0 %v1430
    %v1914 = vpop.f32.mrf.mxu0
    %v1915 = vadd.f32 0.0, %v1914
    %1916 = vmatmul.f32.gmra.mxu0 %v1431
    %v1917 = vpop.f32.mrf.mxu0
    %v1918 = vadd.f32 0.0, %v1917
    %1919 = vdwg.mxu0
    %v1920 = vadd.f32 %v1839, %v1897
    %v1921 = vadd.f32 %v1842, %v1900
    %v1922 = vadd.f32 %v1845, %v1903
    %v1923 = vadd.f32 %v1848, %v1906
    %v1924 = vadd.f32 %v1851, %v1909
    %v1925 = vadd.f32 %v1854, %v1912
    %v1926 = vadd.f32 %v1857, %v1915
    %v1927 = vadd.f32 %v1860, %v1918
    %s1928 = scalar_lea.vmem [#allocation7], 384
    %v1929 = vld [vmem:[%s1928] sm:$0xff]
    %v1930 = vld [vmem:[%s1928 + $0x8] sm:$0xff]
    %v1931 = vld [vmem:[%s1928 + $0x10] sm:$0xff]
    %v1932 = vld [vmem:[%s1928 + $0x18] sm:$0xff]
    %v1933 = vld [vmem:[%s1928 + $0x20] sm:$0xff]
    %v1934 = vld [vmem:[%s1928 + $0x28] sm:$0xff]
    %v1935 = vld [vmem:[%s1928 + $0x30] sm:$0xff]
    %v1936 = vld [vmem:[%s1928 + $0x38] sm:$0xff]
    %v1937 = vld [vmem:[%s1928 + $0x40] sm:$0xff]
    %v1938 = vld [vmem:[%s1928 + $0x48] sm:$0xff]
    %v1939 = vld [vmem:[%s1928 + $0x50] sm:$0xff]
    %v1940 = vld [vmem:[%s1928 + $0x58] sm:$0xff]
    %v1941 = vld [vmem:[%s1928 + $0x60] sm:$0xff]
    %v1942 = vld [vmem:[%s1928 + $0x68] sm:$0xff]
    %v1943 = vld [vmem:[%s1928 + $0x70] sm:$0xff]
    %v1944 = vld [vmem:[%s1928 + $0x78] sm:$0xff]
    %1945 = vmatpush.msra.mxu0 %v1944
    %1946 = vmatpush.msra.mxu0 %v1943
    %1947 = vmatpush.msra.mxu0 %v1942
    %1948 = vmatpush.msra.mxu0 %v1941
    %1949 = vmatpush.msra.mxu0 %v1940
    %1950 = vmatpush.msra.mxu0 %v1939
    %1951 = vmatpush.msra.mxu0 %v1938
    %1952 = vmatpush.msra.mxu0 %v1937
    %1953 = vmatpush.msra.mxu0 %v1936
    %1954 = vmatpush.msra.mxu0 %v1935
    %1955 = vmatpush.msra.mxu0 %v1934
    %1956 = vmatpush.msra.mxu0 %v1933
    %1957 = vmatpush.msra.mxu0 %v1932
    %1958 = vmatpush.msra.mxu0 %v1931
    %1959 = vmatpush.msra.mxu0 %v1930
    %1960 = vmatpush.msra.mxu0 %v1929
    %1961 = vmatmul.f32.gmra.mxu0 %v1425
    %v1962 = vpop.f32.mrf.mxu0
    %v1963 = vadd.f32 0.0, %v1962
    %1964 = vmatmul.f32.gmra.mxu0 %v1426
    %v1965 = vpop.f32.mrf.mxu0
    %v1966 = vadd.f32 0.0, %v1965
    %1967 = vmatmul.f32.gmra.mxu0 %v1427
    %v1968 = vpop.f32.mrf.mxu0
    %v1969 = vadd.f32 0.0, %v1968
    %1970 = vmatmul.f32.gmra.mxu0 %v1428
    %v1971 = vpop.f32.mrf.mxu0
    %v1972 = vadd.f32 0.0, %v1971
    %1973 = vmatmul.f32.gmra.mxu0 %v1429
    %v1974 = vpop.f32.mrf.mxu0
    %v1975 = vadd.f32 0.0, %v1974
    %1976 = vmatmul.f32.gmra.mxu0 %v1430
    %v1977 = vpop.f32.mrf.mxu0
    %v1978 = vadd.f32 0.0, %v1977
    %1979 = vmatmul.f32.gmra.mxu0 %v1431
    %v1980 = vpop.f32.mrf.mxu0
    %v1981 = vadd.f32 0.0, %v1980
    %1982 = vmatmul.f32.gmra.mxu0 %v1432
    %v1983 = vpop.f32.mrf.mxu0
    %v1984 = vadd.f32 0.0, %v1983
    %1985 = vdwg.mxu0
    %v1986 = vadd.f32 %v1920, %v1963
    %v1987 = vadd.f32 %v1921, %v1966
    %v1988 = vadd.f32 %v1922, %v1969
    %v1989 = vadd.f32 %v1923, %v1972
    %v1990 = vadd.f32 %v1924, %v1975
    %v1991 = vadd.f32 %v1925, %v1978
    %v1992 = vadd.f32 %v1926, %v1981
    %v1993 = vadd.f32 %v1927, %v1984
    %s1994 = scalar_lea.vmem [#allocation7], 512
    %v1995 = vld [vmem:[%s1994] sm:$0xff]
    %v1996 = vld [vmem:[%s1994 + $0x8] sm:$0xff]
    %v1997 = vld [vmem:[%s1994 + $0x10] sm:$0xff]
    %v1998 = vld [vmem:[%s1994 + $0x18] sm:$0xff]
    %v1999 = vld [vmem:[%s1994 + $0x20] sm:$0xff]
    %v2000 = vld [vmem:[%s1994 + $0x28] sm:$0xff]
    %v2001 = vld [vmem:[%s1994 + $0x30] sm:$0xff]
    %v2002 = vld [vmem:[%s1994 + $0x38] sm:$0xff]
    %v2003 = vld [vmem:[%s1994 + $0x40] sm:$0xff]
    %v2004 = vld [vmem:[%s1994 + $0x48] sm:$0xff]
    %v2005 = vld [vmem:[%s1994 + $0x50] sm:$0xff]
    %v2006 = vld [vmem:[%s1994 + $0x58] sm:$0xff]
    %v2007 = vld [vmem:[%s1994 + $0x60] sm:$0xff]
    %v2008 = vld [vmem:[%s1994 + $0x68] sm:$0xff]
    %v2009 = vld [vmem:[%s1994 + $0x70] sm:$0xff]
    %v2010 = vld [vmem:[%s1994 + $0x78] sm:$0xff]
    %2011 = vmatpush.msra.mxu0 %v2010
    %2012 = vmatpush.msra.mxu0 %v2009
    %2013 = vmatpush.msra.mxu0 %v2008
    %2014 = vmatpush.msra.mxu0 %v2007
    %2015 = vmatpush.msra.mxu0 %v2006
    %2016 = vmatpush.msra.mxu0 %v2005
    %2017 = vmatpush.msra.mxu0 %v2004
    %2018 = vmatpush.msra.mxu0 %v2003
    %2019 = vmatpush.msra.mxu0 %v2002
    %2020 = vmatpush.msra.mxu0 %v2001
    %2021 = vmatpush.msra.mxu0 %v2000
    %2022 = vmatpush.msra.mxu0 %v1999
    %2023 = vmatpush.msra.mxu0 %v1998
    %2024 = vmatpush.msra.mxu0 %v1997
    %2025 = vmatpush.msra.mxu0 %v1996
    %2026 = vmatpush.msra.mxu0 %v1995
    %2027 = vmatmul.f32.gmra.mxu0 %v1426
    %v2028 = vpop.f32.mrf.mxu0
    %v2029 = vadd.f32 0.0, %v2028
    %2030 = vmatmul.f32.gmra.mxu0 %v1427
    %v2031 = vpop.f32.mrf.mxu0
    %v2032 = vadd.f32 0.0, %v2031
    %2033 = vmatmul.f32.gmra.mxu0 %v1428
    %v2034 = vpop.f32.mrf.mxu0
    %v2035 = vadd.f32 0.0, %v2034
    %2036 = vmatmul.f32.gmra.mxu0 %v1429
    %v2037 = vpop.f32.mrf.mxu0
    %v2038 = vadd.f32 0.0, %v2037
    %2039 = vmatmul.f32.gmra.mxu0 %v1430
    %v2040 = vpop.f32.mrf.mxu0
    %v2041 = vadd.f32 0.0, %v2040
    %2042 = vmatmul.f32.gmra.mxu0 %v1431
    %v2043 = vpop.f32.mrf.mxu0
    %v2044 = vadd.f32 0.0, %v2043
    %2045 = vmatmul.f32.gmra.mxu0 %v1432
    %v2046 = vpop.f32.mrf.mxu0
    %v2047 = vadd.f32 0.0, %v2046
    %2048 = vmatmul.f32.gmra.mxu0 %v1433
    %v2049 = vpop.f32.mrf.mxu0
    %v2050 = vadd.f32 0.0, %v2049
    %2051 = vdwg.mxu0
    %v2052 = vadd.f32 %v1986, %v2029
    %v2053 = vadd.f32 %v1987, %v2032
    %v2054 = vadd.f32 %v1988, %v2035
    %v2055 = vadd.f32 %v1989, %v2038
    %v2056 = vadd.f32 %v1990, %v2041
    %v2057 = vadd.f32 %v1991, %v2044
    %v2058 = vadd.f32 %v1992, %v2047
    %v2059 = vadd.f32 %v1993, %v2050
    %v2060 = vmax.f32 %v1739, %v2052
    %v2061 = vmax.f32 %v1740, %v2053
    %v2062 = vmax.f32 %v1741, %v2054
    %v2063 = vmax.f32 %v1742, %v2055
    %v2064 = vmax.f32 %v1743, %v2056
    %v2065 = vmax.f32 %v1744, %v2057
    %v2066 = vmax.f32 %v1745, %v2058
    %v2067 = vmax.f32 %v1746, %v2059
    %v2068 = vld [vmem:[%s8] sm:$0x1]
    %v2070 = vperm.slane %v2068, 0
    %v2072 = vadd.f32 %v2060, %v2070
    %v2073 = vadd.f32 %v2061, %v2070
    %v2074 = vadd.f32 %v2062, %v2070
    %v2075 = vadd.f32 %v2063, %v2070
    %v2076 = vadd.f32 %v2064, %v2070
    %v2077 = vadd.f32 %v2065, %v2070
    %v2078 = vadd.f32 %v2066, %v2070
    %v2079 = vadd.f32 %v2067, %v2070
    %v2080 = vmax.f32 %v2072, 0.0
    %v2081 = vmax.f32 %v2073, 0.0
    %v2082 = vmax.f32 %v2074, 0.0
    %v2083 = vmax.f32 %v2075, 0.0
    %v2084 = vmax.f32 %v2076, 0.0
    %v2085 = vmax.f32 %v2077, 0.0
    %v2086 = vmax.f32 %v2078, 0.0
    %v2087 = vmax.f32 %v2079, 0.0
    %v2088 = vmax.f32 %v2080, %v2081
    %v2089 = vmax.f32 %v2082, %v2083
    %v2090 = vmax.f32 %v2084, %v2085
    %v2091 = vmax.f32 %v2086, %v2087
    %v2092 = vld [vmem:[#allocation9] sm:$0xff]
    %v2093 = vld [vmem:[#allocation9 + $0x8] sm:$0xff]
    %v2094 = vld [vmem:[#allocation9 + $0x10] sm:$0xff]
    %v2095 = vld [vmem:[#allocation9 + $0x18] sm:$0xff]
    %v2096 = vld [vmem:[#allocation9 + $0x20] sm:$0xff]
    %v2097 = vld [vmem:[#allocation9 + $0x28] sm:$0xff]
    %v2098 = vld [vmem:[#allocation9 + $0x30] sm:$0xff]
    %v2099 = vld [vmem:[#allocation9 + $0x38] sm:$0xff]
    %v2100 = vld [vmem:[#allocation9 + $0x40] sm:$0xff]
    %v2101 = vld [vmem:[#allocation9 + $0x48] sm:$0xff]
    %v2102 = vld [vmem:[#allocation9 + $0x50] sm:$0xff]
    %v2103 = vld [vmem:[#allocation9 + $0x58] sm:$0xff]
    %v2104 = vld [vmem:[#allocation9 + $0x60] sm:$0xff]
    %v2105 = vld [vmem:[#allocation9 + $0x68] sm:$0xff]
    %v2106 = vld [vmem:[#allocation9 + $0x70] sm:$0xff]
    %v2107 = vld [vmem:[#allocation9 + $0x78] sm:$0xff]
    %s2108 = scalar_lea.vmem [#allocation9], 128
    %v2109 = vld [vmem:[%s2108] sm:$0xff]
    %v2110 = vld [vmem:[%s2108 + $0x8] sm:$0xff]
    %v2111 = vld [vmem:[%s2108 + $0x10] sm:$0xff]
    %v2112 = vld [vmem:[%s2108 + $0x18] sm:$0xff]
    %v2113 = vld [vmem:[%s2108 + $0x20] sm:$0xff]
    %v2114 = vld [vmem:[%s2108 + $0x28] sm:$0xff]
    %v2115 = vld [vmem:[%s2108 + $0x30] sm:$0xff]
    %v2116 = vld [vmem:[%s2108 + $0x38] sm:$0xff]
    %v2117 = vld [vmem:[%s2108 + $0x40] sm:$0xff]
    %v2118 = vld [vmem:[%s2108 + $0x48] sm:$0xff]
    %v2119 = vld [vmem:[%s2108 + $0x50] sm:$0xff]
    %v2120 = vld [vmem:[%s2108 + $0x58] sm:$0xff]
    %v2121 = vld [vmem:[%s2108 + $0x60] sm:$0xff]
    %v2122 = vld [vmem:[%s2108 + $0x68] sm:$0xff]
    %v2123 = vld [vmem:[%s2108 + $0x70] sm:$0xff]
    %v2124 = vld [vmem:[%s2108 + $0x78] sm:$0xff]
    %2125 = vmatpush.msra.mxu0 %v2124
    %2126 = vmatpush.msra.mxu0 %v2123
    %2127 = vmatpush.msra.mxu0 %v2122
    %2128 = vmatpush.msra.mxu0 %v2121
    %2129 = vmatpush.msra.mxu0 %v2120
    %2130 = vmatpush.msra.mxu0 %v2119
    %2131 = vmatpush.msra.mxu0 %v2118
    %2132 = vmatpush.msra.mxu0 %v2117
    %2133 = vmatpush.msra.mxu0 %v2116
    %2134 = vmatpush.msra.mxu0 %v2115
    %2135 = vmatpush.msra.mxu0 %v2114
    %2136 = vmatpush.msra.mxu0 %v2113
    %2137 = vmatpush.msra.mxu0 %v2112
    %2138 = vmatpush.msra.mxu0 %v2111
    %2139 = vmatpush.msra.mxu0 %v2110
    %2140 = vmatpush.msra.mxu0 %v2109
    %2141 = vmatmul.f32.gmra.mxu0 %v2089
    %v2142 = vpop.f32.mrf.mxu0
    %v2143 = vadd.f32 0.0, %v2142
    %2144 = vdwg.mxu0
    %2145 = vmatpush.msra.mxu0 %v2107
    %2146 = vmatpush.msra.mxu0 %v2106
    %2147 = vmatpush.msra.mxu0 %v2105
    %2148 = vmatpush.msra.mxu0 %v2104
    %2149 = vmatpush.msra.mxu0 %v2103
    %2150 = vmatpush.msra.mxu0 %v2102
    %2151 = vmatpush.msra.mxu0 %v2101
    %2152 = vmatpush.msra.mxu0 %v2100
    %2153 = vmatpush.msra.mxu0 %v2099
    %2154 = vmatpush.msra.mxu0 %v2098
    %2155 = vmatpush.msra.mxu0 %v2097
    %2156 = vmatpush.msra.mxu0 %v2096
    %2157 = vmatpush.msra.mxu0 %v2095
    %2158 = vmatpush.msra.mxu0 %v2094
    %2159 = vmatpush.msra.mxu0 %v2093
    %2160 = vmatpush.msra.mxu0 %v2092
    %2161 = vmatmul.f32.gmra.mxu0 %v2088
    %v2162 = vpop.f32.mrf.mxu0
    %v2163 = vadd.f32 %v2143, %v2162
    %2164 = vdwg.mxu0
    %s2165 = scalar_lea.vmem [#allocation9], 256
    %v2166 = vld [vmem:[%s2165] sm:$0xff]
    %v2167 = vld [vmem:[%s2165 + $0x8] sm:$0xff]
    %v2168 = vld [vmem:[%s2165 + $0x10] sm:$0xff]
    %v2169 = vld [vmem:[%s2165 + $0x18] sm:$0xff]
    %v2170 = vld [vmem:[%s2165 + $0x20] sm:$0xff]
    %v2171 = vld [vmem:[%s2165 + $0x28] sm:$0xff]
    %v2172 = vld [vmem:[%s2165 + $0x30] sm:$0xff]
    %v2173 = vld [vmem:[%s2165 + $0x38] sm:$0xff]
    %v2174 = vld [vmem:[%s2165 + $0x40] sm:$0xff]
    %v2175 = vld [vmem:[%s2165 + $0x48] sm:$0xff]
    %v2176 = vld [vmem:[%s2165 + $0x50] sm:$0xff]
    %v2177 = vld [vmem:[%s2165 + $0x58] sm:$0xff]
    %v2178 = vld [vmem:[%s2165 + $0x60] sm:$0xff]
    %v2179 = vld [vmem:[%s2165 + $0x68] sm:$0xff]
    %v2180 = vld [vmem:[%s2165 + $0x70] sm:$0xff]
    %v2181 = vld [vmem:[%s2165 + $0x78] sm:$0xff]
    %2182 = vmatpush.msra.mxu0 %v2181
    %2183 = vmatpush.msra.mxu0 %v2180
    %2184 = vmatpush.msra.mxu0 %v2179
    %2185 = vmatpush.msra.mxu0 %v2178
    %2186 = vmatpush.msra.mxu0 %v2177
    %2187 = vmatpush.msra.mxu0 %v2176
    %2188 = vmatpush.msra.mxu0 %v2175
    %2189 = vmatpush.msra.mxu0 %v2174
    %2190 = vmatpush.msra.mxu0 %v2173
    %2191 = vmatpush.msra.mxu0 %v2172
    %2192 = vmatpush.msra.mxu0 %v2171
    %2193 = vmatpush.msra.mxu0 %v2170
    %2194 = vmatpush.msra.mxu0 %v2169
    %2195 = vmatpush.msra.mxu0 %v2168
    %2196 = vmatpush.msra.mxu0 %v2167
    %2197 = vmatpush.msra.mxu0 %v2166
    %2198 = vmatmul.f32.gmra.mxu0 %v2090
    %v2199 = vpop.f32.mrf.mxu0
    %v2200 = vadd.f32 0.0, %v2199
    %2201 = vdwg.mxu0
    %v2202 = vadd.f32 %v2163, %v2200
    %s2203 = scalar_lea.vmem [#allocation9], 384
    %v2204 = vld [vmem:[%s2203] sm:$0xff]
    %v2205 = vld [vmem:[%s2203 + $0x8] sm:$0xff]
    %v2206 = vld [vmem:[%s2203 + $0x10] sm:$0xff]
    %v2207 = vld [vmem:[%s2203 + $0x18] sm:$0xff]
    %v2208 = vld [vmem:[%s2203 + $0x20] sm:$0xff]
    %v2209 = vld [vmem:[%s2203 + $0x28] sm:$0xff]
    %v2210 = vld [vmem:[%s2203 + $0x30] sm:$0xff]
    %v2211 = vld [vmem:[%s2203 + $0x38] sm:$0xff]
    %v2212 = vld [vmem:[%s2203 + $0x40] sm:$0xff]
    %v2213 = vld [vmem:[%s2203 + $0x48] sm:$0xff]
    %v2214 = vld [vmem:[%s2203 + $0x50] sm:$0xff]
    %v2215 = vld [vmem:[%s2203 + $0x58] sm:$0xff]
    %v2216 = vld [vmem:[%s2203 + $0x60] sm:$0xff]
    %v2217 = vld [vmem:[%s2203 + $0x68] sm:$0xff]
    %v2218 = vld [vmem:[%s2203 + $0x70] sm:$0xff]
    %v2219 = vld [vmem:[%s2203 + $0x78] sm:$0xff]
    %2220 = vmatpush.msra.mxu0 %v2219
    %2221 = vmatpush.msra.mxu0 %v2218
    %2222 = vmatpush.msra.mxu0 %v2217
    %2223 = vmatpush.msra.mxu0 %v2216
    %2224 = vmatpush.msra.mxu0 %v2215
    %2225 = vmatpush.msra.mxu0 %v2214
    %2226 = vmatpush.msra.mxu0 %v2213
    %2227 = vmatpush.msra.mxu0 %v2212
    %2228 = vmatpush.msra.mxu0 %v2211
    %2229 = vmatpush.msra.mxu0 %v2210
    %2230 = vmatpush.msra.mxu0 %v2209
    %2231 = vmatpush.msra.mxu0 %v2208
    %2232 = vmatpush.msra.mxu0 %v2207
    %2233 = vmatpush.msra.mxu0 %v2206
    %2234 = vmatpush.msra.mxu0 %v2205
    %2235 = vmatpush.msra.mxu0 %v2204
    %2236 = vmatmul.f32.gmra.mxu0 %v2091
    %v2237 = vpop.f32.mrf.mxu0
    %v2238 = vadd.f32 0.0, %v2237
    %2239 = vdwg.mxu0
    %v2240 = vadd.f32 %v2202, %v2238
    %v2241 = vld [vmem:[%s9] sm:$0x1]
    %v2243 = vperm.slane %v2241, 0
    %v2245 = vadd.f32 %v2240, %v2243
    %v2246 = vmax.f32 %v2245, 0.0
    %v2247 = vld [vmem:[%s6] sm:$0xff]
    %v2248 = vld [vmem:[%s6 + $0x8] sm:$0xff]
    %v2249 = vld [vmem:[%s6 + $0x10] sm:$0xff]
    %v2250 = vld [vmem:[%s6 + $0x18] sm:$0xff]
    %v2251 = vld [vmem:[%s6 + $0x20] sm:$0xff]
    %v2252 = vld [vmem:[%s6 + $0x28] sm:$0xff]
    %v2253 = vld [vmem:[%s6 + $0x30] sm:$0xff]
    %v2254 = vld [vmem:[%s6 + $0x38] sm:$0xff]
    %v2255 = vld [vmem:[%s6 + $0x40] sm:$0xff]
    %v2256 = vld [vmem:[%s6 + $0x48] sm:$0xff]
    %v2257 = vld [vmem:[%s6 + $0x50] sm:$0xff]
    %v2258 = vld [vmem:[%s6 + $0x58] sm:$0xff]
    %v2259 = vld [vmem:[%s6 + $0x60] sm:$0xff]
    %v2260 = vld [vmem:[%s6 + $0x68] sm:$0xff]
    %v2261 = vld [vmem:[%s6 + $0x70] sm:$0xff]
    %v2262 = vld [vmem:[%s6 + $0x78] sm:$0xff]
    %v2263 = vld [vmem:[%s10] sm:$0x1]
    %v2265 = vperm.slane %v2263, 0
    %2267 = vmatpush.msra.mxu0 %v2262
    %2268 = vmatpush.msra.mxu0 %v2261
    %2269 = vmatpush.msra.mxu0 %v2260
    %2270 = vmatpush.msra.mxu0 %v2259
    %2271 = vmatpush.msra.mxu0 %v2258
    %2272 = vmatpush.msra.mxu0 %v2257
    %2273 = vmatpush.msra.mxu0 %v2256
    %2274 = vmatpush.msra.mxu0 %v2255
    %2275 = vmatpush.msra.mxu0 %v2254
    %2276 = vmatpush.msra.mxu0 %v2253
    %2277 = vmatpush.msra.mxu0 %v2252
    %2278 = vmatpush.msra.mxu0 %v2251
    %2279 = vmatpush.msra.mxu0 %v2250
    %2280 = vmatpush.msra.mxu0 %v2249
    %2281 = vmatpush.msra.mxu0 %v2248
    %2282 = vmatpush.msra.mxu0 %v2247
    %2283 = vmatmul.f32.gmra.mxu0 %v2246
    %v2284 = vpop.f32.mrf.mxu0
    %v2285 = vadd.f32 %v2265, %v2284
    %2286 = vdwg.mxu0
    %2287 = vst [vmem:[%s11] sm:$0xff] %v2285
    // Predicated region
    $region66: #{lenet5half_forward.1} parent=1 // pred_check
      _
    $region67: #{lenet5half_forward.1} parent=1 // pred_check_branch
      %2289 = sbr.rel (0) target = $region69
    $region68: #{lenet5half_forward.1} parent=1 // pred_region
      _
    $region69: #{lenet5half_forward.1} parent=1 // pred_fallthru
      _
    // Predicated region
    $region70: #{lenet5half_forward.1} parent=1 // pred_check
      _
    $region71: #{lenet5half_forward.1} parent=1 // pred_check_branch
      %2291 = sbr.rel (0) target = $region73
    $region72: #{lenet5half_forward.1} parent=1 // pred_region
      _
    $region73: #{lenet5half_forward.1} parent=1 // pred_fallthru
      _
    %2292 = vsyncpa [#allocation3], 1
    %2293 = vsyncpa [#allocation5], 1
    %2294 = vsyncpa [#allocation8], 1

</llo_original>
